<compile_context>
chip_gen: v6e
topology: v6e:2x2x1
jax: 0.10.0
libtpu: 0.0.40
codegen_flags: <defaults>
</compile_context>

<pallas_src>
import functools

import numpy as np
import jax
import jax.numpy as jnp
from jax.experimental import pallas as pl
from jax.experimental.pallas import tpu as pltpu

_VMEM_LIMIT = 32 * 1024 * 1024
_NPAD = 128          # lane-dense tile width for packed NonLocal patches
_SUB = 8             # sublane alignment of the fused q/k projection segments
_NEG = -1e30


# ----------------------------------------------------------------------------
# Pallas kernels
# ----------------------------------------------------------------------------
def _conv1x1_bn_relu_kernel(x_ref, w_ref, b_ref, o_ref):
    """1x1 conv (BN folded) + ReLU:  y = relu(W @ x + b).  bf16 MXU, f32 accum."""
    y = jnp.dot(w_ref[...], x_ref[0], preferred_element_type=jnp.float32)
    o_ref[0] = jnp.maximum(y + b_ref[...], 0.0).astype(o_ref.dtype)


def _packed_nl_kernel(sid_ref, x_ref, w_ref, mb_ref, cs_ref, o_ref, *, c):
    """Packed per-patch NonLocal.  One grid step = one 128-lane group holding
    several patches of one AGCB_Patch scale.

    x_aug : (c+8, 128) f32, rows [patch channels ; ones-row ; zero pad].
    w     : (2*8+c+1, c+8) bf16, rows [Wq|bq pad8 ; Wk|bk pad8 ; g*Wv|g*bv ;
            denominator ones-row], last column = bias.
    mb    : (128,128) additive block-diagonal mask (0 valid / -1e30 invalid).
    cs    : (c,128) lane-dense GCA channel scale.
    y     = (g*V@att^T + x) * cs   (NonLocal residual + per-patch attention).
    """
    del sid_ref  # consumed only by the weight index_map
    x_aug = x_ref[0, 0]                                   # (c+8, 128) f32
    qkv = jnp.dot(w_ref[0], x_aug.astype(jnp.bfloat16),
                  preferred_element_type=jnp.float32)     # (2*_SUB+c+1, 128)
    q = qkv[:_SUB]                                        # aligned views
    k = qkv[_SUB:2 * _SUB]
    v_aug = qkv[2 * _SUB:]                                # (c+1, 128); last row == denom ones

    energy = jax.lax.dot_general(q, k, (((0,), (0,)), ((), ())),
                                 preferred_element_type=jnp.float32)  # (128,128)
    energy = energy + mb_ref[0]                           # block-diagonal mask
    e = jnp.exp(energy - jnp.max(energy, axis=-1, keepdims=True))
    # masked entries underflow to exactly 0 after the exp -> no second select.

    out_aug = jax.lax.dot_general(v_aug.astype(jnp.bfloat16), e.astype(jnp.bfloat16),
                                  (((1,), (1,)), ((), ())),
                                  preferred_element_type=jnp.float32)  # (c+1, 128)
    inv_denom = pl.reciprocal(out_aug[c:], approx=True)   # (1,128) softmax denom, EUP
    out = out_aug[:c] * inv_denom                         # gamma * V @ att^T (normalized)
    y = (out + x_aug[:c]) * cs_ref[0, 0]                  # residual, then GCA scale
    o_ref[0, 0] = y.astype(o_ref.dtype)


def _conv3x3_kernel(x_ref, w_ref, mask_ref, res_ref, o_ref, col_ref, *, img_w):
    """3x3 conv (pad=1, BN + AGCB gamma folded) + residual + ReLU.

    In-VMEM im2col: 9 lane-rolled, border-masked taps are packed into a
    (9*C+8, N) bf16 scratch (last 8 rows = [1;0..0] bias block), contracted
    with one (Cout, 9*C+8) matmul.
    """
    x = x_ref[0, 0]                                       # (C, N) f32
    cin, n = x.shape
    for tap in range(9):
        dy, dx = tap // 3 - 1, tap % 3 - 1
        shift = dy * img_w + dx
        xs = x if shift == 0 else pltpu.roll(x, (-shift) % n, axis=1)
        col_ref[tap * cin:(tap + 1) * cin, :] = (xs * mask_ref[tap]).astype(col_ref.dtype)
    ones_pad = (jax.lax.broadcasted_iota(jnp.int32, (8, n), 0) == 0)
    col_ref[9 * cin:, :] = ones_pad.astype(col_ref.dtype)

    y = jnp.dot(w_ref[0], col_ref[...], preferred_element_type=jnp.float32)
    o_ref[0, 0] = jnp.maximum(y + res_ref[0], 0.0).astype(o_ref.dtype)


# ----------------------------------------------------------------------------
# Kernel wrappers
# ----------------------------------------------------------------------------
def _pick_tile(n, max_tile=2048):
    if n <= max_tile:
        return n
    if n % 128 == 0:
        t = max_tile - (max_tile % 128)
        while t >= 128:
            if n % t == 0:
                return t
            t -= 128
    return n


def conv1x1_bn_relu(x_bcn, w_eff, b_eff):
    B, Cin, N = x_bcn.shape
    Cout = w_eff.shape[0]
    tn = _pick_tile(N)
    return pl.pallas_call(
        _conv1x1_bn_relu_kernel,
        out_shape=jax.ShapeDtypeStruct((B, Cout, N), jnp.float32),
        grid=(B, N // tn),
        in_specs=[
            pl.BlockSpec((1, Cin, tn), lambda b, n: (b, 0, n)),
            pl.BlockSpec((Cout, Cin), lambda b, n: (0, 0)),
            pl.BlockSpec((Cout, 1), lambda b, n: (0, 0)),
        ],
        out_specs=pl.BlockSpec((1, Cout, tn), lambda b, n: (b, 0, n)),
        compiler_params=pltpu.CompilerParams(
            dimension_semantics=("parallel", "parallel"),
            vmem_limit_bytes=_VMEM_LIMIT),
    )(x_bcn.astype(jnp.bfloat16), w_eff.astype(jnp.bfloat16),
      b_eff.reshape(Cout, 1))


def packed_nonlocal(sid, x_aug, w_all, mask_bias, chan_scale):
    """All patch groups of all scales in one pallas_call; per-group scale id in
    SMEM (scalar prefetch) selects the stacked per-block weights."""
    B, G, caug, npad = x_aug.shape
    c = chan_scale.shape[2]
    rows = w_all.shape[1]
    kern = functools.partial(_packed_nl_kernel, c=c)
    return pl.pallas_call(
        kern,
        out_shape=jax.ShapeDtypeStruct((B, G, c, npad), jnp.float32),
        grid_spec=pltpu.PrefetchScalarGridSpec(
            num_scalar_prefetch=1,
            grid=(B, G),
            in_specs=[
                pl.BlockSpec((1, 1, caug, npad), lambda b, g, s: (b, g, 0, 0)),
                pl.BlockSpec((1, rows, caug), lambda b, g, s: (s[g], 0, 0)),
                pl.BlockSpec((1, npad, npad), lambda b, g, s: (g, 0, 0)),
                pl.BlockSpec((1, 1, c, npad), lambda b, g, s: (b, g, 0, 0)),
            ],
            out_specs=pl.BlockSpec((1, 1, c, npad), lambda b, g, s: (b, g, 0, 0)),
        ),
        compiler_params=pltpu.CompilerParams(
            dimension_semantics=("parallel", "arbitrary"),
            vmem_limit_bytes=_VMEM_LIMIT),
    )(sid, x_aug, w_all, mask_bias, chan_scale)


def conv3x3_bn_res_relu(ctx_all, w_all, res, H, W):
    """ctx_all: (B, K, C, N) per-block context maps, w_all: (K, Cout, 9*C+8)
    (BN + AGCB gamma + bias folded), res: (B, C, N) shared residual."""
    B, K, C, N = ctx_all.shape
    Cout = w_all.shape[1]
    kcols = w_all.shape[2]

    # Static border-validity masks for the 9 taps (host constants).
    col = np.arange(N)
    hh, ww = col // W, col % W
    masks = []
    for dy in (-1, 0, 1):
        for dx in (-1, 0, 1):
            valid = (hh + dy >= 0) & (hh + dy < H) & (ww + dx >= 0) & (ww + dx < W)
            masks.append(valid.astype(np.float32))
    mask_taps = jnp.asarray(np.stack(masks, 0).reshape(9, 1, N))

    # TODO(synk): halo-tile the N axis before H*W grows large (v7x has 64 MiB
    # VMEM); at 16x16 the full-N-per-image block is tiny.
    kern = functools.partial(_conv3x3_kernel, img_w=W)
    return pl.pallas_call(
        kern,
        out_shape=jax.ShapeDtypeStruct((B, K, Cout, N), jnp.float32),
        grid=(B, K),
        in_specs=[
            pl.BlockSpec((1, 1, C, N), lambda b, k: (b, k, 0, 0)),
            pl.BlockSpec((1, Cout, kcols), lambda b, k: (k, 0, 0)),
            pl.BlockSpec((9, 1, N), lambda b, k: (0, 0, 0)),
            pl.BlockSpec((1, C, N), lambda b, k: (b, 0, 0)),
        ],
        out_specs=pl.BlockSpec((1, 1, Cout, N), lambda b, k: (b, k, 0, 0)),
        scratch_shapes=[pltpu.VMEM((9 * C + 8, N), jnp.bfloat16)],
        compiler_params=pltpu.CompilerParams(
            dimension_semantics=("parallel", "parallel"),
            vmem_limit_bytes=_VMEM_LIMIT),
    )(ctx_all, w_all.astype(jnp.bfloat16), mask_taps, res)


# ----------------------------------------------------------------------------
# Plain-JAX glue (tiny reductions, BN folding, static packing metadata)
# ----------------------------------------------------------------------------
def adaptive_max_pool2d(x, out_size):
    # TODO(synk): tiny adaptive max-pool kept in plain JAX (PyTorch window
    # formula: floor(i*H/s) .. ceil((i+1)*H/s)).
    B, C, H, W = x.shape
    s = out_size
    rows = []
    for i in range(s):
        h0, h1 = (i * H) // s, -(-((i + 1) * H) // s)
        cols = []
        for j in range(s):
            w0, w1 = (j * W) // s, -(-((j + 1) * W) // s)
            cols.append(jnp.max(x[:, :, h0:h1, w0:w1], axis=(2, 3)))
        rows.append(jnp.stack(cols, axis=-1))
    return jnp.stack(rows, axis=-2)


def fold_bn_1x1(w, b, bn, eps=1e-5):
    inv = bn['weight'] / jnp.sqrt(bn['var'] + eps)
    return w * inv[:, None], (b - bn['mean']) * inv + bn['bias']


def fold_bn_3x3(w, b, bn, eps=1e-5):
    """w: (Cout, Cin, 3, 3) -> (Cout, 9*Cin) tap-major columns, BN folded."""
    inv = bn['weight'] / jnp.sqrt(bn['var'] + eps)
    cout, cin = w.shape[0], w.shape[1]
    w_cols = jnp.transpose(w, (0, 2, 3, 1)).reshape(cout, 9 * cin) * inv[:, None]
    b_eff = (b - bn['mean']) * inv + bn['bias']
    return w_cols, b_eff


def gca_channel_plain(x, nl, scale):
    """GCA_Channel (att_mode='origin') in plain JAX: its NonLocal has only
    s*s (= 4 or 9) spatial positions -> a kernel would be pure dispatch cost."""
    B, C, _, _ = x.shape
    flat = adaptive_max_pool2d(x, scale).reshape(B, C, scale * scale)
    q = jnp.einsum('ic,bcn->bin', nl['wq'], flat) + nl['bq'][None, :, None]
    k = jnp.einsum('ic,bcn->bin', nl['wk'], flat) + nl['bk'][None, :, None]
    v = jnp.einsum('oc,bcn->bon', nl['wv'], flat) + nl['bv'][None, :, None]
    energy = jnp.einsum('bin,bim->bnm', q, k)
    att = jax.nn.softmax(energy, axis=-1)
    out = jnp.einsum('bcj,bij->bci', v, att)
    y = nl['gamma'][0] * out + flat
    return jax.nn.sigmoid(y).reshape(B, C, scale, scale)


def _patch_bounds(H, W, scale):
    step_h, step_w = H // scale, W // scale
    bounds = []
    for i in range(scale):
        h0 = i * step_h
        h1 = H if i == scale - 1 else min(h0 + step_h, H)
        for j in range(scale):
            w0 = j * step_w
            w1 = W if j == scale - 1 else min(w0 + step_w, W)
            bounds.append((h0, h1, w0, w1))
    return bounds


def _build_packing(H, W, scales, npad=_NPAD):
    """Static (numpy) metadata: pack consecutive patches into <=128-lane groups,
    with per-lane gather indices, patch ids, scale ids, block-diagonal mask and
    per-scale scatter-back indices."""
    N = H * W
    gather, pid, patch_of_lane, sid, scatter, ranges = [], [], [], [], [], []
    for si, s in enumerate(scales):
        bounds = _patch_bounds(H, W, s)
        scat = np.zeros((N,), np.int32)
        groups, cur, cur_n = [], [], 0
        for p_idx, (h0, h1, w0, w1) in enumerate(bounds):
            n = (h1 - h0) * (w1 - w0)
            assert n <= npad
            if cur and cur_n + n > npad:
                groups.append(cur)
                cur, cur_n = [], 0
            cur.append(p_idx)
            cur_n += n
        groups.append(cur)

        g_base = len(gather)
        for gl, grp in enumerate(groups):
            gvec = np.zeros((npad,), np.int32)
            pvec = np.full((npad,), -1, np.int32)
            off = 0
            for p_idx in grp:
                h0, h1, w0, w1 = bounds[p_idx]
                hh, ww = np.meshgrid(np.arange(h0, h1), np.arange(w0, w1), indexing='ij')
                flat = (hh * W + ww).reshape(-1).astype(np.int32)
                n = flat.shape[0]
                gvec[off:off + n] = flat
                pvec[off:off + n] = p_idx
                scat[flat] = (g_base + gl) * npad + off + np.arange(n, dtype=np.int32)
                off += n
            gather.append(gvec)
            pid.append(pvec)
            patch_of_lane.append(np.maximum(pvec, 0))
            sid.append(si)
        ranges.append((g_base, len(gather)))
        scatter.append(scat)

    gather = np.stack(gather, 0)
    pid = np.stack(pid, 0)
    patch_of_lane = np.stack(patch_of_lane, 0)
    sid = np.asarray(sid, np.int32)
    scatter = np.stack(scatter, 0)
    mask_bias = np.where((pid[:, :, None] == pid[:, None, :]) & (pid[:, None, :] >= 0),
                         0.0, _NEG).astype(np.float32)
    return dict(gather=gather, patch_of_lane=patch_of_lane, sid=sid,
                scatter=scatter, mask_bias=mask_bias, ranges=ranges)


def _build_nl_weights(block_params, c):
    """Stacked fused projections: rows [Wq|bq pad->8 ; Wk|bk pad->8 ; g*Wv|g*bv ;
    ones-row], columns [weights(c) ; bias ; zero pad(7)]."""
    caug = c + _SUB
    mats = []
    for p in block_params:
        nl = p['nl']
        ci = nl['wq'].shape[0]
        assert ci <= _SUB
        g = nl['gamma'][0]

        def seg(wmat, bvec, rows, scale):
            m = jnp.zeros((rows, caug), jnp.float32)
            m = m.at[:wmat.shape[0], :c].set(scale * wmat)
            m = m.at[:wmat.shape[0], c].set(scale * bvec)
            return m

        wq = seg(nl['wq'], nl['bq'], _SUB, 1.0)
        wk = seg(nl['wk'], nl['bk'], _SUB, 1.0)
        wv = seg(nl['wv'], nl['bv'], c, g)
        ones_row = jnp.zeros((1, caug), jnp.float32).at[0, c].set(1.0)
        mats.append(jnp.concatenate([wq, wk, wv, ones_row], axis=0))
    return jnp.stack(mats, 0).astype(jnp.bfloat16)       # (n_blocks, 2*8+c+1, c+8)


# ----------------------------------------------------------------------------
# CPM forward
# ----------------------------------------------------------------------------
def cpm_forward(x, params, scales):
    B, Pl, H, W = x.shape
    N = H * W
    K = len(scales)

    # conv1 (1x1 + BN + ReLU)
    w1, b1 = fold_bn_1x1(params['conv1_w'], params['conv1_b'], params['bn1'])
    Cr = w1.shape[0]
    reduced_flat = conv1x1_bn_relu(x.reshape(B, Pl, N), w1, b1)          # (B, Cr, N)
    reduced = reduced_flat.reshape(B, Cr, H, W)

    # GCA channel attention per block (tiny s*s NonLocal, plain JAX)
    gcas = [gca_channel_plain(reduced, params['blocks'][i]['att_nl'], scales[i])
            for i in range(K)]

    # ---- packed patch NonLocal over all patches of both scales ----
    meta = _build_packing(H, W, scales)
    G, Npad = meta['sid'].shape[0], _NPAD

    gather = jnp.asarray(meta['gather'].reshape(-1))
    x_pk = jnp.take(reduced_flat, gather, axis=2)
    x_pk = x_pk.reshape(B, Cr, G, Npad).transpose(0, 2, 1, 3)            # (B, G, Cr, Npad)
    ones = jnp.ones((B, G, 1, Npad), jnp.float32)
    zpad = jnp.zeros((B, G, _SUB - 1, Npad), jnp.float32)
    x_aug = jnp.concatenate([x_pk, ones, zpad], axis=2)                  # (B, G, Cr+8, Npad)

    cs_parts = []
    for si, s in enumerate(scales):
        g0, g1 = meta['ranges'][si]
        lane_patch = jnp.asarray(meta['patch_of_lane'][g0:g1].reshape(-1))
        cs = jnp.take(gcas[si].reshape(B, Cr, s * s), lane_patch, axis=2)
        cs_parts.append(cs.reshape(B, Cr, g1 - g0, Npad).transpose(0, 2, 1, 3))
    chan_scale = jnp.concatenate(cs_parts, axis=1)                       # (B, G, Cr, Npad)

    w_nl = _build_nl_weights(params['blocks'], Cr)
    y_pk = packed_nonlocal(jnp.asarray(meta['sid']), x_aug, w_nl,
                           jnp.asarray(meta['mask_bias']), chan_scale)   # (B, G, Cr, Npad)

    # scatter packed lanes back to per-block (B, Cr, N) context maps (one gather)
    y_flat = y_pk.transpose(0, 2, 1, 3).reshape(B, Cr, G * Npad)
    scatter = jnp.asarray(meta['scatter'].reshape(-1))
    ctx_all = jnp.take(y_flat, scatter, axis=2)
    ctx_all = ctx_all.reshape(B, Cr, K, N).transpose(0, 2, 1, 3)         # (B, K, Cr, N)

    # ---- fused 3x3 conv + BN(+AGCB gamma) + residual + ReLU for both blocks ----
    w_conv = []
    for p in params['blocks']:
        w_cols, b_eff = fold_bn_3x3(p['conv_w'], p['conv_b'], p['bn'])
        g = p['gamma'][0]
        w_conv.append(jnp.concatenate(
            [g * w_cols, (g * b_eff)[:, None], jnp.zeros((Cr, 7), jnp.float32)], axis=1))
    w_conv = jnp.stack(w_conv, 0)                                        # (K, Cr, 9*Cr+8)
    blk_out = conv3x3_bn_res_relu(ctx_all, w_conv, reduced_flat, H, W)   # (B, K, Cr, N)

    # concat [reduced, block0, block1] then conv2 (1x1 + BN + ReLU)
    cat = jnp.concatenate([reduced_flat[:, None], blk_out], axis=1)
    cat = cat.reshape(B, (K + 1) * Cr, N)
    w2, b2 = fold_bn_1x1(params['conv2_w'], params['conv2_b'], params['bn2'])
    out = conv1x1_bn_relu(cat, w2, b2)
    return out.reshape(B, Pl, H, W)


# ----------------------------------------------------------------------------
# Deterministic parameter init (shapes follow the PyTorch __init__)
# ----------------------------------------------------------------------------
def _f(key, shape, scale=0.1):
    return scale * jax.random.normal(key, shape, dtype=jnp.float32)


def init_bn(key, c):
    k = jax.random.split(key, 4)
    return dict(weight=1.0 + _f(k[0], (c,)), bias=_f(k[1], (c,)),
                mean=_f(k[2], (c,)), var=1.0 + jnp.abs(_f(k[3], (c,))))


def init_nl(key, planes, reduce_ratio, gamma=0.3):
    inter = max(planes // reduce_ratio, 1)
    k = jax.random.split(key, 6)
    # NOTE: PyTorch inits NonLocal gamma to 0 (identity); a nonzero deterministic
    # value is used so the attention path is actually exercised.
    return dict(wq=_f(k[0], (inter, planes)), bq=_f(k[1], (inter,)),
                wk=_f(k[2], (inter, planes)), bk=_f(k[3], (inter,)),
                wv=_f(k[4], (planes, planes)), bv=_f(k[5], (planes,)),
                gamma=jnp.full((1,), gamma, jnp.float32))


def init_agcb(key, planes, rr_nl):
    k = jax.random.split(key, 5)
    return dict(nl=init_nl(k[0], planes, rr_nl, gamma=0.3),
                att_nl=init_nl(k[1], planes, rr_nl, gamma=0.25),
                conv_w=_f(k[2], (planes, planes, 3, 3)),
                conv_b=_f(k[3], (planes,)),
                bn=init_bn(k[4], planes),
                gamma=jnp.full((1,), 0.2, jnp.float32))


def init_cpm(key, planes, scales, reduce_ratios):
    inter = planes // reduce_ratios[0]
    ch = inter * (len(scales) + 1)
    k = jax.random.split(key, 6 + len(scales))
    return dict(
        conv1_w=_f(k[0], (inter, planes)), conv1_b=_f(k[1], (inter,)),
        bn1=init_bn(k[2], inter),
        conv2_w=_f(k[3], (planes, ch)), conv2_b=_f(k[4], (planes,)),
        bn2=init_bn(k[5], planes),
        blocks=[init_agcb(k[6 + i], inter, reduce_ratios[1]) for i in range(len(scales))],
    )


# ----------------------------------------------------------------------------
if __name__ == "__main__":
    planes = 64
    scales = (2, 3)
    reduce_ratios = (4, 8)
    B, H, W = 2, 16, 16

    key = jax.random.PRNGKey(0)
    kx, kp = jax.random.split(key)
    x = jax.random.normal(kx, (B, planes, H, W), dtype=jnp.float32)
    params = init_cpm(kp, planes, scales, reduce_ratios)

    fwd = jax.jit(lambda inp: cpm_forward(inp, params, scales))
    out = fwd(x)
    jax.block_until_ready(out)

    assert out.shape == (B, planes, H, W)
    assert bool(jnp.all(jnp.isfinite(out)))
    print("KERNEL_OK")
</pallas_src>

<mosaic_0001>
module attributes {stable_mosaic.version = 11 : i64} {
  func.func @_conv1x1_bn_relu_kernel(%arg0: i32, %arg1: i32, %arg2: memref<1x64x256xbf16, #tpu.memory_space<vmem>>, %arg3: memref<16x64xbf16, #tpu.memory_space<vmem>>, %arg4: memref<16x1xf32, #tpu.memory_space<vmem>>, %arg5: memref<1x16x256xf32, #tpu.memory_space<vmem>>) attributes {dimension_semantics = [#tpu.dimension_semantics<parallel>, #tpu.dimension_semantics<parallel>], iteration_bounds = array<i64: 2, 1>, scalar_prefetch = 0 : i64, scratch_operands = 0 : i64, tpu.core_type = #tpu.core_type<tc>, window_params = [{transform_indices = @transform_0, window_bounds = array<i64: 1, 64, 256>}, {pipeline_mode = #tpu.pipeline_mode<synchronous>, transform_indices = @transform_1, window_bounds = array<i64: 16, 64>}, {pipeline_mode = #tpu.pipeline_mode<synchronous>, transform_indices = @transform_2, window_bounds = array<i64: 16, 1>}, {transform_indices = @transform_3, window_bounds = array<i64: 1, 16, 256>}]} {
    %c0 = arith.constant 0 : index
    %c0_0 = arith.constant 0 : index
    %0 = vector.load %arg3[%c0, %c0_0] : memref<16x64xbf16, #tpu.memory_space<vmem>>, vector<16x64xbf16>
    %c0_1 = arith.constant 0 : index
    %c0_2 = arith.constant 0 : index
    %c0_3 = arith.constant 0 : index
    %1 = vector.load %arg2[%c0_1, %c0_2, %c0_3] : memref<1x64x256xbf16, #tpu.memory_space<vmem>>, vector<1x64x256xbf16>
    %2 = vector.shape_cast %1 : vector<1x64x256xbf16> to vector<64x256xbf16>
    %cst = arith.constant dense<0.000000e+00> : vector<16x256xf32>
    %3 = tpu.matmul %0, %2, %cst {dimension_numbers = #tpu.dot_dimension_numbers<[1], [0], [0], [1], [0, 0, 1, 1], [], []>} : vector<16x64xbf16>, vector<64x256xbf16>, vector<16x256xf32> -> vector<16x256xf32>
    %c0_4 = arith.constant 0 : index
    %c0_5 = arith.constant 0 : index
    %4 = vector.load %arg4[%c0_4, %c0_5] : memref<16x1xf32, #tpu.memory_space<vmem>>, vector<16x1xf32>
    %5 = vector.broadcast %4 : vector<16x1xf32> to vector<16x256xf32>
    %6 = arith.addf %3, %5 : vector<16x256xf32>
    %cst_6 = arith.constant 0.000000e+00 : f32
    %7 = vector.broadcast %cst_6 : f32 to vector<16x256xf32>
    %8 = arith.maximumf %6, %7 : vector<16x256xf32>
    %c0_7 = arith.constant 0 : index
    %c0_8 = arith.constant 0 : index
    %c0_9 = arith.constant 0 : index
    %9 = vector.load %arg5[%c0_7, %c0_8, %c0_9] : memref<1x16x256xf32, #tpu.memory_space<vmem>>, vector<1x16x256xf32>
    %10 = vector.shape_cast %9 : vector<1x16x256xf32> to vector<16x256xf32>
    %11 = vector.shape_cast %8 : vector<16x256xf32> to vector<1x16x256xf32>
    tpu.vector_store %arg5[%c0_7, %c0_8, %c0_9], %11 {strides = array<i32>} : memref<1x16x256xf32, #tpu.memory_space<vmem>>, vector<1x16x256xf32>,
    return
  }
  func.func @transform_0(%arg0: i32, %arg1: i32) -> (i32, i32, i32) {
    %c0_i32 = arith.constant 0 : i32
    %c0_i32_0 = arith.constant 0 : i32
    return %arg0, %c0_i32, %arg1 : i32, i32, i32
  }
  func.func @transform_1(%arg0: i32, %arg1: i32) -> (i32, i32) {
    %c0_i32 = arith.constant 0 : i32
    %c0_i32_0 = arith.constant 0 : i32
    %c0_i32_1 = arith.constant 0 : i32
    return %c0_i32, %c0_i32_0 : i32, i32
  }
  func.func @transform_2(%arg0: i32, %arg1: i32) -> (i32, i32) {
    %c0_i32 = arith.constant 0 : i32
    %c0_i32_0 = arith.constant 0 : i32
    %c0_i32_1 = arith.constant 0 : i32
    return %c0_i32, %c0_i32_0 : i32, i32
  }
  func.func @transform_3(%arg0: i32, %arg1: i32) -> (i32, i32, i32) {
    %c0_i32 = arith.constant 0 : i32
    %c0_i32_0 = arith.constant 0 : i32
    return %arg0, %c0_i32, %arg1 : i32, i32, i32
  }
}

module attributes {stable_mosaic.version = 11 : i64} {
  func.func @_packed_nl_kernel(%arg0: i32, %arg1: i32, %arg2: memref<5xi32, #tpu.memory_space<smem>>, %arg3: memref<1x1x24x128xf32, #tpu.memory_space<vmem>>, %arg4: memref<1x33x24xbf16, #tpu.memory_space<vmem>>, %arg5: memref<1x128x128xf32, #tpu.memory_space<vmem>>, %arg6: memref<1x1x16x128xf32, #tpu.memory_space<vmem>>, %arg7: memref<1x1x16x128xf32, #tpu.memory_space<vmem>>) attributes {dimension_semantics = [#tpu.dimension_semantics<parallel>, #tpu.dimension_semantics<arbitrary>], iteration_bounds = array<i64: 2, 5>, scalar_prefetch = 1 : i64, scratch_operands = 0 : i64, tpu.core_type = #tpu.core_type<tc>, window_params = [{transform_indices = @transform_0, window_bounds = array<i64: 1, 1, 24, 128>}, {transform_indices = @transform_1, window_bounds = array<i64: 1, 33, 24>}, {transform_indices = @transform_2, window_bounds = array<i64: 1, 128, 128>}, {transform_indices = @transform_3, window_bounds = array<i64: 1, 1, 16, 128>}, {transform_indices = @transform_4, window_bounds = array<i64: 1, 1, 16, 128>}]} {
    %c0 = arith.constant 0 : index
    %c0_0 = arith.constant 0 : index
    %c0_1 = arith.constant 0 : index
    %c0_2 = arith.constant 0 : index
    %0 = vector.load %arg3[%c0, %c0_0, %c0_1, %c0_2] : memref<1x1x24x128xf32, #tpu.memory_space<vmem>>, vector<1x1x24x128xf32>
    %1 = vector.shape_cast %0 : vector<1x1x24x128xf32> to vector<24x128xf32>
    %c0_3 = arith.constant 0 : index
    %c0_4 = arith.constant 0 : index
    %c0_5 = arith.constant 0 : index
    %2 = vector.load %arg4[%c0_3, %c0_4, %c0_5] : memref<1x33x24xbf16, #tpu.memory_space<vmem>>, vector<1x33x24xbf16>
    %3 = vector.shape_cast %2 : vector<1x33x24xbf16> to vector<33x24xbf16>
    %4 = arith.truncf %1 : vector<24x128xf32> to vector<24x128xbf16>
    %cst = arith.constant dense<0.000000e+00> : vector<33x128xf32>
    %5 = tpu.matmul %3, %4, %cst {dimension_numbers = #tpu.dot_dimension_numbers<[1], [0], [0], [1], [0, 0, 1, 1], [], []>} : vector<33x24xbf16>, vector<24x128xbf16>, vector<33x128xf32> -> vector<33x128xf32>
    %6 = vector.extract_strided_slice %5 {offsets = [0, 0], sizes = [8, 128], strides = [1, 1]} : vector<33x128xf32> to vector<8x128xf32>
    %7 = vector.extract_strided_slice %5 {offsets = [8, 0], sizes = [8, 128], strides = [1, 1]} : vector<33x128xf32> to vector<8x128xf32>
    %8 = vector.extract_strided_slice %5 {offsets = [16, 0], sizes = [17, 128], strides = [1, 1]} : vector<33x128xf32> to vector<17x128xf32>
    %cst_6 = arith.constant dense<0.000000e+00> : vector<128x128xf32>
    %9 = tpu.matmul %6, %7, %cst_6 {dimension_numbers = #tpu.dot_dimension_numbers<[0], [0], [1], [1], [0, 1, 1, 1], [], []>} : vector<8x128xf32>, vector<8x128xf32>, vector<128x128xf32> -> vector<128x128xf32>
    %c0_7 = arith.constant 0 : index
    %c0_8 = arith.constant 0 : index
    %c0_9 = arith.constant 0 : index
    %10 = vector.load %arg5[%c0_7, %c0_8, %c0_9] : memref<1x128x128xf32, #tpu.memory_space<vmem>>, vector<1x128x128xf32>
    %11 = vector.shape_cast %10 : vector<1x128x128xf32> to vector<128x128xf32>
    %12 = arith.addf %9, %11 : vector<128x128xf32>
    %cst_10 = arith.constant dense<0xFF800000> : vector<128xf32>
    %13 = vector.multi_reduction <maximumf>, %12, %cst_10 [1] : vector<128x128xf32> to vector<128xf32>
    %14 = vector.shape_cast %13 : vector<128xf32> to vector<128x1xf32>
    %15 = vector.broadcast %14 : vector<128x1xf32> to vector<128x128xf32>
    %16 = arith.subf %12, %15 : vector<128x128xf32>
    %17 = math.exp %16 : vector<128x128xf32>
    %18 = arith.truncf %8 : vector<17x128xf32> to vector<17x128xbf16>
    %19 = arith.truncf %17 : vector<128x128xf32> to vector<128x128xbf16>
    %cst_11 = arith.constant dense<0.000000e+00> : vector<17x128xf32>
    %20 = tpu.matmul %18, %19, %cst_11 {dimension_numbers = #tpu.dot_dimension_numbers<[1], [1], [0], [0], [0, 0, 1, 0], [], []>} : vector<17x128xbf16>, vector<128x128xbf16>, vector<17x128xf32> -> vector<17x128xf32>
    %21 = vector.extract_strided_slice %20 {offsets = [16, 0], sizes = [1, 128], strides = [1, 1]} : vector<17x128xf32> to vector<1x128xf32>
    %22 = tpu.reciprocal %21 {approx = true} : vector<1x128xf32> -> vector<1x128xf32>
    %23 = vector.extract_strided_slice %20 {offsets = [0, 0], sizes = [16, 128], strides = [1, 1]} : vector<17x128xf32> to vector<16x128xf32>
    %24 = vector.broadcast %22 : vector<1x128xf32> to vector<16x128xf32>
    %25 = arith.mulf %23, %24 : vector<16x128xf32>
    %26 = vector.extract_strided_slice %1 {offsets = [0, 0], sizes = [16, 128], strides = [1, 1]} : vector<24x128xf32> to vector<16x128xf32>
    %27 = arith.addf %25, %26 : vector<16x128xf32>
    %c0_12 = arith.constant 0 : index
    %c0_13 = arith.constant 0 : index
    %c0_14 = arith.constant 0 : index
    %c0_15 = arith.constant 0 : index
    %28 = vector.load %arg6[%c0_12, %c0_13, %c0_14, %c0_15] : memref<1x1x16x128xf32, #tpu.memory_space<vmem>>, vector<1x1x16x128xf32>
    %29 = vector.shape_cast %28 : vector<1x1x16x128xf32> to vector<16x128xf32>
    %30 = arith.mulf %27, %29 : vector<16x128xf32>
    %c0_16 = arith.constant 0 : index
    %c0_17 = arith.constant 0 : index
    %c0_18 = arith.constant 0 : index
    %c0_19 = arith.constant 0 : index
    %31 = vector.load %arg7[%c0_16, %c0_17, %c0_18, %c0_19] : memref<1x1x16x128xf32, #tpu.memory_space<vmem>>, vector<1x1x16x128xf32>
    %32 = vector.shape_cast %31 : vector<1x1x16x128xf32> to vector<16x128xf32>
    %33 = vector.shape_cast %30 : vector<16x128xf32> to vector<1x1x16x128xf32>
    tpu.vector_store %arg7[%c0_16, %c0_17, %c0_18, %c0_19], %33 {strides = array<i32>} : memref<1x1x16x128xf32, #tpu.memory_space<vmem>>, vector<1x1x16x128xf32>,
    return
  }
  func.func @transform_0(%arg0: i32, %arg1: i32, %arg2: memref<5xi32, #tpu.memory_space<smem>>) -> (i32, i32, i32, i32) {
    %c0_i32 = arith.constant 0 : i32
    %c0_i32_0 = arith.constant 0 : i32
    %c0_i32_1 = arith.constant 0 : i32
    return %arg0, %arg1, %c0_i32, %c0_i32_0 : i32, i32, i32, i32
  }
  func.func @transform_1(%arg0: i32, %arg1: i32, %arg2: memref<5xi32, #tpu.memory_space<smem>>) -> (i32, i32, i32) {
    %0 = arith.index_cast %arg1 : i32 to index
    %1 = memref.load %arg2[%0] : memref<5xi32, #tpu.memory_space<smem>>
    %c0_i32 = arith.constant 0 : i32
    %c0_i32_0 = arith.constant 0 : i32
    %c0_i32_1 = arith.constant 0 : i32
    return %1, %c0_i32, %c0_i32_0 : i32, i32, i32
  }
  func.func @transform_2(%arg0: i32, %arg1: i32, %arg2: memref<5xi32, #tpu.memory_space<smem>>) -> (i32, i32, i32) {
    %c0_i32 = arith.constant 0 : i32
    %c0_i32_0 = arith.constant 0 : i32
    %c0_i32_1 = arith.constant 0 : i32
    return %arg1, %c0_i32, %c0_i32_0 : i32, i32, i32
  }
  func.func @transform_3(%arg0: i32, %arg1: i32, %arg2: memref<5xi32, #tpu.memory_space<smem>>) -> (i32, i32, i32, i32) {
    %c0_i32 = arith.constant 0 : i32
    %c0_i32_0 = arith.constant 0 : i32
    %c0_i32_1 = arith.constant 0 : i32
    return %arg0, %arg1, %c0_i32, %c0_i32_0 : i32, i32, i32, i32
  }
  func.func @transform_4(%arg0: i32, %arg1: i32, %arg2: memref<5xi32, #tpu.memory_space<smem>>) -> (i32, i32, i32, i32) {
    %c0_i32 = arith.constant 0 : i32
    %c0_i32_0 = arith.constant 0 : i32
    %c0_i32_1 = arith.constant 0 : i32
    return %arg0, %arg1, %c0_i32, %c0_i32_0 : i32, i32, i32, i32
  }
}

module attributes {stable_mosaic.version = 11 : i64} {
  func.func @_conv3x3_kernel(%arg0: i32, %arg1: i32, %arg2: memref<1x1x16x256xf32, #tpu.memory_space<vmem>>, %arg3: memref<1x16x152xbf16, #tpu.memory_space<vmem>>, %arg4: memref<9x1x256xf32, #tpu.memory_space<vmem>>, %arg5: memref<1x16x256xf32, #tpu.memory_space<vmem>>, %arg6: memref<1x1x16x256xf32, #tpu.memory_space<vmem>>, %arg7: memref<152x256xbf16, #tpu.memory_space<vmem>>) attributes {dimension_semantics = [#tpu.dimension_semantics<parallel>, #tpu.dimension_semantics<parallel>], iteration_bounds = array<i64: 2, 2>, scalar_prefetch = 0 : i64, scratch_operands = 1 : i64, tpu.core_type = #tpu.core_type<tc>, window_params = [{transform_indices = @transform_0, window_bounds = array<i64: 1, 1, 16, 256>}, {transform_indices = @transform_1, window_bounds = array<i64: 1, 16, 152>}, {pipeline_mode = #tpu.pipeline_mode<synchronous>, transform_indices = @transform_2, window_bounds = array<i64: 9, 1, 256>}, {transform_indices = @transform_3, window_bounds = array<i64: 1, 16, 256>}, {transform_indices = @transform_4, window_bounds = array<i64: 1, 1, 16, 256>}]} {
    %c0 = arith.constant 0 : index
    %c0_0 = arith.constant 0 : index
    %c0_1 = arith.constant 0 : index
    %c0_2 = arith.constant 0 : index
    %0 = vector.load %arg2[%c0, %c0_0, %c0_1, %c0_2] : memref<1x1x16x256xf32, #tpu.memory_space<vmem>>, vector<1x1x16x256xf32>
    %1 = vector.shape_cast %0 : vector<1x1x16x256xf32> to vector<16x256xf32>
    %c17_i32 = arith.constant 17 : i32
    %2 = tpu.dynamic_rotate %1 by %c17_i32 dim 1 : vector<16x256xf32>, i32 -> vector<16x256xf32>
    %c0_3 = arith.constant 0 : index
    %c0_4 = arith.constant 0 : index
    %c0_5 = arith.constant 0 : index
    %3 = vector.load %arg4[%c0_3, %c0_4, %c0_5] : memref<9x1x256xf32, #tpu.memory_space<vmem>>, vector<1x1x256xf32>
    %4 = vector.shape_cast %3 : vector<1x1x256xf32> to vector<1x256xf32>
    %5 = vector.broadcast %4 : vector<1x256xf32> to vector<16x256xf32>
    %6 = arith.mulf %2, %5 : vector<16x256xf32>
    %7 = arith.truncf %6 : vector<16x256xf32> to vector<16x256xbf16>
    %c0_6 = arith.constant 0 : index
    %c0_7 = arith.constant 0 : index
    %8 = vector.load %arg7[%c0_6, %c0_7] : memref<152x256xbf16, #tpu.memory_space<vmem>>, vector<16x256xbf16>
    tpu.vector_store %arg7[%c0_6, %c0_7], %7 {strides = array<i32>} : memref<152x256xbf16, #tpu.memory_space<vmem>>, vector<16x256xbf16>,
    %c16_i32 = arith.constant 16 : i32
    %9 = tpu.dynamic_rotate %1 by %c16_i32 dim 1 : vector<16x256xf32>, i32 -> vector<16x256xf32>
    %c1 = arith.constant 1 : index
    %c0_8 = arith.constant 0 : index
    %c0_9 = arith.constant 0 : index
    %10 = vector.load %arg4[%c1, %c0_8, %c0_9] : memref<9x1x256xf32, #tpu.memory_space<vmem>>, vector<1x1x256xf32>
    %11 = vector.shape_cast %10 : vector<1x1x256xf32> to vector<1x256xf32>
    %12 = vector.broadcast %11 : vector<1x256xf32> to vector<16x256xf32>
    %13 = arith.mulf %9, %12 : vector<16x256xf32>
    %14 = arith.truncf %13 : vector<16x256xf32> to vector<16x256xbf16>
    %c16 = arith.constant 16 : index
    %c0_10 = arith.constant 0 : index
    %15 = vector.load %arg7[%c16, %c0_10] : memref<152x256xbf16, #tpu.memory_space<vmem>>, vector<16x256xbf16>
    tpu.vector_store %arg7[%c16, %c0_10], %14 {strides = array<i32>} : memref<152x256xbf16, #tpu.memory_space<vmem>>, vector<16x256xbf16>,
    %c15_i32 = arith.constant 15 : i32
    %16 = tpu.dynamic_rotate %1 by %c15_i32 dim 1 : vector<16x256xf32>, i32 -> vector<16x256xf32>
    %c2 = arith.constant 2 : index
    %c0_11 = arith.constant 0 : index
    %c0_12 = arith.constant 0 : index
    %17 = vector.load %arg4[%c2, %c0_11, %c0_12] : memref<9x1x256xf32, #tpu.memory_space<vmem>>, vector<1x1x256xf32>
    %18 = vector.shape_cast %17 : vector<1x1x256xf32> to vector<1x256xf32>
    %19 = vector.broadcast %18 : vector<1x256xf32> to vector<16x256xf32>
    %20 = arith.mulf %16, %19 : vector<16x256xf32>
    %21 = arith.truncf %20 : vector<16x256xf32> to vector<16x256xbf16>
    %c32 = arith.constant 32 : index
    %c0_13 = arith.constant 0 : index
    %22 = vector.load %arg7[%c32, %c0_13] : memref<152x256xbf16, #tpu.memory_space<vmem>>, vector<16x256xbf16>
    tpu.vector_store %arg7[%c32, %c0_13], %21 {strides = array<i32>} : memref<152x256xbf16, #tpu.memory_space<vmem>>, vector<16x256xbf16>,
    %c1_i32 = arith.constant 1 : i32
    %23 = tpu.dynamic_rotate %1 by %c1_i32 dim 1 : vector<16x256xf32>, i32 -> vector<16x256xf32>
    %c3 = arith.constant 3 : index
    %c0_14 = arith.constant 0 : index
    %c0_15 = arith.constant 0 : index
    %24 = vector.load %arg4[%c3, %c0_14, %c0_15] : memref<9x1x256xf32, #tpu.memory_space<vmem>>, vector<1x1x256xf32>
    %25 = vector.shape_cast %24 : vector<1x1x256xf32> to vector<1x256xf32>
    %26 = vector.broadcast %25 : vector<1x256xf32> to vector<16x256xf32>
    %27 = arith.mulf %23, %26 : vector<16x256xf32>
    %28 = arith.truncf %27 : vector<16x256xf32> to vector<16x256xbf16>
    %c48 = arith.constant 48 : index
    %c0_16 = arith.constant 0 : index
    %29 = vector.load %arg7[%c48, %c0_16] : memref<152x256xbf16, #tpu.memory_space<vmem>>, vector<16x256xbf16>
    tpu.vector_store %arg7[%c48, %c0_16], %28 {strides = array<i32>} : memref<152x256xbf16, #tpu.memory_space<vmem>>, vector<16x256xbf16>,
    %c4 = arith.constant 4 : index
    %c0_17 = arith.constant 0 : index
    %c0_18 = arith.constant 0 : index
    %30 = vector.load %arg4[%c4, %c0_17, %c0_18] : memref<9x1x256xf32, #tpu.memory_space<vmem>>, vector<1x1x256xf32>
    %31 = vector.shape_cast %30 : vector<1x1x256xf32> to vector<1x256xf32>
    %32 = vector.broadcast %31 : vector<1x256xf32> to vector<16x256xf32>
    %33 = arith.mulf %1, %32 : vector<16x256xf32>
    %34 = arith.truncf %33 : vector<16x256xf32> to vector<16x256xbf16>
    %c64 = arith.constant 64 : index
    %c0_19 = arith.constant 0 : index
    %35 = vector.load %arg7[%c64, %c0_19] : memref<152x256xbf16, #tpu.memory_space<vmem>>, vector<16x256xbf16>
    tpu.vector_store %arg7[%c64, %c0_19], %34 {strides = array<i32>} : memref<152x256xbf16, #tpu.memory_space<vmem>>, vector<16x256xbf16>,
    %c255_i32 = arith.constant 255 : i32
    %36 = tpu.dynamic_rotate %1 by %c255_i32 dim 1 : vector<16x256xf32>, i32 -> vector<16x256xf32>
    %c5 = arith.constant 5 : index
    %c0_20 = arith.constant 0 : index
    %c0_21 = arith.constant 0 : index
    %37 = vector.load %arg4[%c5, %c0_20, %c0_21] : memref<9x1x256xf32, #tpu.memory_space<vmem>>, vector<1x1x256xf32>
    %38 = vector.shape_cast %37 : vector<1x1x256xf32> to vector<1x256xf32>
    %39 = vector.broadcast %38 : vector<1x256xf32> to vector<16x256xf32>
    %40 = arith.mulf %36, %39 : vector<16x256xf32>
    %41 = arith.truncf %40 : vector<16x256xf32> to vector<16x256xbf16>
    %c80 = arith.constant 80 : index
    %c0_22 = arith.constant 0 : index
    %42 = vector.load %arg7[%c80, %c0_22] : memref<152x256xbf16, #tpu.memory_space<vmem>>, vector<16x256xbf16>
    tpu.vector_store %arg7[%c80, %c0_22], %41 {strides = array<i32>} : memref<152x256xbf16, #tpu.memory_space<vmem>>, vector<16x256xbf16>,
    %c241_i32 = arith.constant 241 : i32
    %43 = tpu.dynamic_rotate %1 by %c241_i32 dim 1 : vector<16x256xf32>, i32 -> vector<16x256xf32>
    %c6 = arith.constant 6 : index
    %c0_23 = arith.constant 0 : index
    %c0_24 = arith.constant 0 : index
    %44 = vector.load %arg4[%c6, %c0_23, %c0_24] : memref<9x1x256xf32, #tpu.memory_space<vmem>>, vector<1x1x256xf32>
    %45 = vector.shape_cast %44 : vector<1x1x256xf32> to vector<1x256xf32>
    %46 = vector.broadcast %45 : vector<1x256xf32> to vector<16x256xf32>
    %47 = arith.mulf %43, %46 : vector<16x256xf32>
    %48 = arith.truncf %47 : vector<16x256xf32> to vector<16x256xbf16>
    %c96 = arith.constant 96 : index
    %c0_25 = arith.constant 0 : index
    %49 = vector.load %arg7[%c96, %c0_25] : memref<152x256xbf16, #tpu.memory_space<vmem>>, vector<16x256xbf16>
    tpu.vector_store %arg7[%c96, %c0_25], %48 {strides = array<i32>} : memref<152x256xbf16, #tpu.memory_space<vmem>>, vector<16x256xbf16>,
    %c240_i32 = arith.constant 240 : i32
    %50 = tpu.dynamic_rotate %1 by %c240_i32 dim 1 : vector<16x256xf32>, i32 -> vector<16x256xf32>
    %c7 = arith.constant 7 : index
    %c0_26 = arith.constant 0 : index
    %c0_27 = arith.constant 0 : index
    %51 = vector.load %arg4[%c7, %c0_26, %c0_27] : memref<9x1x256xf32, #tpu.memory_space<vmem>>, vector<1x1x256xf32>
    %52 = vector.shape_cast %51 : vector<1x1x256xf32> to vector<1x256xf32>
    %53 = vector.broadcast %52 : vector<1x256xf32> to vector<16x256xf32>
    %54 = arith.mulf %50, %53 : vector<16x256xf32>
    %55 = arith.truncf %54 : vector<16x256xf32> to vector<16x256xbf16>
    %c112 = arith.constant 112 : index
    %c0_28 = arith.constant 0 : index
    %56 = vector.load %arg7[%c112, %c0_28] : memref<152x256xbf16, #tpu.memory_space<vmem>>, vector<16x256xbf16>
    tpu.vector_store %arg7[%c112, %c0_28], %55 {strides = array<i32>} : memref<152x256xbf16, #tpu.memory_space<vmem>>, vector<16x256xbf16>,
    %c239_i32 = arith.constant 239 : i32
    %57 = tpu.dynamic_rotate %1 by %c239_i32 dim 1 : vector<16x256xf32>, i32 -> vector<16x256xf32>
    %c8 = arith.constant 8 : index
    %c0_29 = arith.constant 0 : index
    %c0_30 = arith.constant 0 : index
    %58 = vector.load %arg4[%c8, %c0_29, %c0_30] : memref<9x1x256xf32, #tpu.memory_space<vmem>>, vector<1x1x256xf32>
    %59 = vector.shape_cast %58 : vector<1x1x256xf32> to vector<1x256xf32>
    %60 = vector.broadcast %59 : vector<1x256xf32> to vector<16x256xf32>
    %61 = arith.mulf %57, %60 : vector<16x256xf32>
    %62 = arith.truncf %61 : vector<16x256xf32> to vector<16x256xbf16>
    %c128 = arith.constant 128 : index
    %c0_31 = arith.constant 0 : index
    %63 = vector.load %arg7[%c128, %c0_31] : memref<152x256xbf16, #tpu.memory_space<vmem>>, vector<16x256xbf16>
    tpu.vector_store %arg7[%c128, %c0_31], %62 {strides = array<i32>} : memref<152x256xbf16, #tpu.memory_space<vmem>>, vector<16x256xbf16>,
    %64 = tpu.iota {dimensions = array<i32: 0>} : vector<8x256xi32>
    %c0_i32 = arith.constant 0 : i32
    %65 = vector.broadcast %c0_i32 : i32 to vector<8x256xi32>
    %66 = arith.cmpi eq, %64, %65 : vector<8x256xi32>
    %67 = arith.extui %66 : vector<8x256xi1> to vector<8x256xi32>
    %68 = arith.sitofp %67 : vector<8x256xi32> to vector<8x256xf32>
    %69 = arith.truncf %68 : vector<8x256xf32> to vector<8x256xbf16>
    %c144 = arith.constant 144 : index
    %c0_32 = arith.constant 0 : index
    %70 = vector.load %arg7[%c144, %c0_32] : memref<152x256xbf16, #tpu.memory_space<vmem>>, vector<8x256xbf16>
    tpu.vector_store %arg7[%c144, %c0_32], %69 {strides = array<i32>} : memref<152x256xbf16, #tpu.memory_space<vmem>>, vector<8x256xbf16>,
    %c0_33 = arith.constant 0 : index
    %c0_34 = arith.constant 0 : index
    %c0_35 = arith.constant 0 : index
    %71 = vector.load %arg3[%c0_33, %c0_34, %c0_35] : memref<1x16x152xbf16, #tpu.memory_space<vmem>>, vector<1x16x152xbf16>
    %72 = vector.shape_cast %71 : vector<1x16x152xbf16> to vector<16x152xbf16>
    %c0_36 = arith.constant 0 : index
    %c0_37 = arith.constant 0 : index
    %73 = vector.load %arg7[%c0_36, %c0_37] : memref<152x256xbf16, #tpu.memory_space<vmem>>, vector<152x256xbf16>
    %cst = arith.constant dense<0.000000e+00> : vector<16x256xf32>
    %74 = tpu.matmul %72, %73, %cst {dimension_numbers = #tpu.dot_dimension_numbers<[1], [0], [0], [1], [0, 0, 1, 1], [], []>} : vector<16x152xbf16>, vector<152x256xbf16>, vector<16x256xf32> -> vector<16x256xf32>
    %c0_38 = arith.constant 0 : index
    %c0_39 = arith.constant 0 : index
    %c0_40 = arith.constant 0 : index
    %75 = vector.load %arg5[%c0_38, %c0_39, %c0_40] : memref<1x16x256xf32, #tpu.memory_space<vmem>>, vector<1x16x256xf32>
    %76 = vector.shape_cast %75 : vector<1x16x256xf32> to vector<16x256xf32>
    %77 = arith.addf %74, %76 : vector<16x256xf32>
    %cst_41 = arith.constant 0.000000e+00 : f32
    %78 = vector.broadcast %cst_41 : f32 to vector<16x256xf32>
    %79 = arith.maximumf %77, %78 : vector<16x256xf32>
    %c0_42 = arith.constant 0 : index
    %c0_43 = arith.constant 0 : index
    %c0_44 = arith.constant 0 : index
    %c0_45 = arith.constant 0 : index
    %80 = vector.load %arg6[%c0_42, %c0_43, %c0_44, %c0_45] : memref<1x1x16x256xf32, #tpu.memory_space<vmem>>, vector<1x1x16x256xf32>
    %81 = vector.shape_cast %80 : vector<1x1x16x256xf32> to vector<16x256xf32>
    %82 = vector.shape_cast %79 : vector<16x256xf32> to vector<1x1x16x256xf32>
    tpu.vector_store %arg6[%c0_42, %c0_43, %c0_44, %c0_45], %82 {strides = array<i32>} : memref<1x1x16x256xf32, #tpu.memory_space<vmem>>, vector<1x1x16x256xf32>,
    return
  }
  func.func @transform_0(%arg0: i32, %arg1: i32) -> (i32, i32, i32, i32) {
    %c0_i32 = arith.constant 0 : i32
    %c0_i32_0 = arith.constant 0 : i32
    %c0_i32_1 = arith.constant 0 : i32
    return %arg0, %arg1, %c0_i32, %c0_i32_0 : i32, i32, i32, i32
  }
  func.func @transform_1(%arg0: i32, %arg1: i32) -> (i32, i32, i32) {
    %c0_i32 = arith.constant 0 : i32
    %c0_i32_0 = arith.constant 0 : i32
    %c0_i32_1 = arith.constant 0 : i32
    return %arg1, %c0_i32, %c0_i32_0 : i32, i32, i32
  }
  func.func @transform_2(%arg0: i32, %arg1: i32) -> (i32, i32, i32) {
    %c0_i32 = arith.constant 0 : i32
    %c0_i32_0 = arith.constant 0 : i32
    %c0_i32_1 = arith.constant 0 : i32
    %c0_i32_2 = arith.constant 0 : i32
    return %c0_i32, %c0_i32_0, %c0_i32_1 : i32, i32, i32
  }
  func.func @transform_3(%arg0: i32, %arg1: i32) -> (i32, i32, i32) {
    %c0_i32 = arith.constant 0 : i32
    %c0_i32_0 = arith.constant 0 : i32
    %c0_i32_1 = arith.constant 0 : i32
    return %arg0, %c0_i32, %c0_i32_0 : i32, i32, i32
  }
  func.func @transform_4(%arg0: i32, %arg1: i32) -> (i32, i32, i32, i32) {
    %c0_i32 = arith.constant 0 : i32
    %c0_i32_0 = arith.constant 0 : i32
    %c0_i32_1 = arith.constant 0 : i32
    return %arg0, %arg1, %c0_i32, %c0_i32_0 : i32, i32, i32, i32
  }
}

module attributes {stable_mosaic.version = 11 : i64} {
  func.func @_conv1x1_bn_relu_kernel(%arg0: i32, %arg1: i32, %arg2: memref<1x48x256xbf16, #tpu.memory_space<vmem>>, %arg3: memref<64x48xbf16, #tpu.memory_space<vmem>>, %arg4: memref<64x1xf32, #tpu.memory_space<vmem>>, %arg5: memref<1x64x256xf32, #tpu.memory_space<vmem>>) attributes {dimension_semantics = [#tpu.dimension_semantics<parallel>, #tpu.dimension_semantics<parallel>], iteration_bounds = array<i64: 2, 1>, scalar_prefetch = 0 : i64, scratch_operands = 0 : i64, tpu.core_type = #tpu.core_type<tc>, window_params = [{transform_indices = @transform_0, window_bounds = array<i64: 1, 48, 256>}, {pipeline_mode = #tpu.pipeline_mode<synchronous>, transform_indices = @transform_1, window_bounds = array<i64: 64, 48>}, {pipeline_mode = #tpu.pipeline_mode<synchronous>, transform_indices = @transform_2, window_bounds = array<i64: 64, 1>}, {transform_indices = @transform_3, window_bounds = array<i64: 1, 64, 256>}]} {
    %c0 = arith.constant 0 : index
    %c0_0 = arith.constant 0 : index
    %0 = vector.load %arg3[%c0, %c0_0] : memref<64x48xbf16, #tpu.memory_space<vmem>>, vector<64x48xbf16>
    %c0_1 = arith.constant 0 : index
    %c0_2 = arith.constant 0 : index
    %c0_3 = arith.constant 0 : index
    %1 = vector.load %arg2[%c0_1, %c0_2, %c0_3] : memref<1x48x256xbf16, #tpu.memory_space<vmem>>, vector<1x48x256xbf16>
    %2 = vector.shape_cast %1 : vector<1x48x256xbf16> to vector<48x256xbf16>
    %cst = arith.constant dense<0.000000e+00> : vector<64x256xf32>
    %3 = tpu.matmul %0, %2, %cst {dimension_numbers = #tpu.dot_dimension_numbers<[1], [0], [0], [1], [0, 0, 1, 1], [], []>} : vector<64x48xbf16>, vector<48x256xbf16>, vector<64x256xf32> -> vector<64x256xf32>
    %c0_4 = arith.constant 0 : index
    %c0_5 = arith.constant 0 : index
    %4 = vector.load %arg4[%c0_4, %c0_5] : memref<64x1xf32, #tpu.memory_space<vmem>>, vector<64x1xf32>
    %5 = vector.broadcast %4 : vector<64x1xf32> to vector<64x256xf32>
    %6 = arith.addf %3, %5 : vector<64x256xf32>
    %cst_6 = arith.constant 0.000000e+00 : f32
    %7 = vector.broadcast %cst_6 : f32 to vector<64x256xf32>
    %8 = arith.maximumf %6, %7 : vector<64x256xf32>
    %c0_7 = arith.constant 0 : index
    %c0_8 = arith.constant 0 : index
    %c0_9 = arith.constant 0 : index
    %9 = vector.load %arg5[%c0_7, %c0_8, %c0_9] : memref<1x64x256xf32, #tpu.memory_space<vmem>>, vector<1x64x256xf32>
    %10 = vector.shape_cast %9 : vector<1x64x256xf32> to vector<64x256xf32>
    %11 = vector.shape_cast %8 : vector<64x256xf32> to vector<1x64x256xf32>
    tpu.vector_store %arg5[%c0_7, %c0_8, %c0_9], %11 {strides = array<i32>} : memref<1x64x256xf32, #tpu.memory_space<vmem>>, vector<1x64x256xf32>,
    return
  }
  func.func @transform_0(%arg0: i32, %arg1: i32) -> (i32, i32, i32) {
    %c0_i32 = arith.constant 0 : i32
    %c0_i32_0 = arith.constant 0 : i32
    return %arg0, %c0_i32, %arg1 : i32, i32, i32
  }
  func.func @transform_1(%arg0: i32, %arg1: i32) -> (i32, i32) {
    %c0_i32 = arith.constant 0 : i32
    %c0_i32_0 = arith.constant 0 : i32
    %c0_i32_1 = arith.constant 0 : i32
    return %c0_i32, %c0_i32_0 : i32, i32
  }
  func.func @transform_2(%arg0: i32, %arg1: i32) -> (i32, i32) {
    %c0_i32 = arith.constant 0 : i32
    %c0_i32_0 = arith.constant 0 : i32
    %c0_i32_1 = arith.constant 0 : i32
    return %c0_i32, %c0_i32_0 : i32, i32
  }
  func.func @transform_3(%arg0: i32, %arg1: i32) -> (i32, i32, i32) {
    %c0_i32 = arith.constant 0 : i32
    %c0_i32_0 = arith.constant 0 : i32
    return %arg0, %c0_i32, %arg1 : i32, i32, i32
  }
}

</mosaic_0001>

<llo_original>
// kernel: _lambda_.4
$region0: #{_lambda_.4}
  #allocation0 [shape = 'u32[]', space=smem, size = 0x4, offset = 0x4, fixed_abs, tag = 'smem constant byte address 0x4 - core index']
  #allocation1 [shape = 'u32[144,128]{1,0:T(1,128)}', space=vmem, size = 0x12000, scoped, tag = 'internal scratch']
  %s0 = inlined_call_operand.vmem [shape: bf16[2,64,256], index: 0, kind: input, shape index: {}]
  %s1 = inlined_call_operand.vmem [shape: bf16[16,64], index: 1, kind: input, shape index: {}]
  %s2 = inlined_call_operand.vmem [shape: f32[16,1], index: 2, kind: input, shape index: {}]
  %s3 = inlined_call_operand.vmem [shape: f32[2,16,256], index: 3, kind: output, shape index: {}]
  %s4 = sld [smem:[#allocation0]]
  $region45: #{_lambda_.4} parent=0
    _
  %s6 = ssub.s32 1, %s4
  %s7 = scalar_select 0, %s6, %s4
  loop: start=0, step=1, limit=4
  $region2: #{_lambda_.4} parent=0 // loop_pre_header
    _
  $region3: #{_lambda_.4} parent=0 // loop_header
    %s9 = sphi 0, %s13
    %p10 = scmp.ge.s32.totalorder %s9, 4
    %s16 = sphi 0, %s28
    %s17 = sphi 0, %s24
    %s18 = sphi 0, %s16
    %s19 = sphi 0, %s17
    %s20 = sphi 0, %s18
    %s21 = sphi 0, %s19
    %s33 = sphi 0, %s35
    %s36 = sphi 0, %s33
    %s37 = sphi 0, %s36
    %s53 = sphi 0, %s37
    %s57 = sphi 0, %s57
    %s59 = sphi 0, %s57
    %s60 = sphi 0, %s59
    %s74 = sphi 0, %s60
    %s78 = sphi 0, %s78
    %s80 = sphi 0, %s78
    %s81 = sphi 0, %s80
    %s95 = sphi 0, %s81
    %s103 = sphi 0, %s105
    %s106 = sphi 0, %s103
    %s107 = sphi 0, %s106
    %s123 = sphi 0, %s107
  $region4: #{_lambda_.4} parent=0 // loop_header_branch
    %12 = sbr.rel (%p10) target = $region8
  $region5: #{_lambda_.4} parent=0 // loop_body
    %s14 = ssub.s32 %s9, 1
    %s15 = ssub.s32 %s9, 2
    %s22 = sadd.s32 1, %s17
    %p23 = scmp.ge.s32.totalorder %s22, 1
    %s24 = scalar_select %p23, 0, %s22
    %s25 = sadd.s32 1, %s16
    %s26 = scalar_select %p23, %s25, %s16
    %p27 = scmp.ge.s32.totalorder %s26, 2
    %s28 = scalar_select %p27, 0, %s26
    %s29 = ssub.s32 %s16, %s28
    %s30 = ssub.s32 %s17, %s24
    %s31 = sor.u32 %s29, %s30
    %p32 = scmp.eq.s32.totalorder %s31, 0
    %s34 = sadd.s32 %s33, 1
    %s35 = scalar_select %p32, %s33, %s34
    %p38 = pneg %p32
    %p39 = scmp.eq.s32.totalorder %s9, 1
    %p40 = por %p38, %p39
    %p41 = scmp.ne.s32.totalorder %s33, %s36
    %p42 = scmp.eq.s32.totalorder %s9, 0
    %p43 = por %p41, %p42
    %p44 = scmp.ne.s32.totalorder %s33, %s36
    %p45 = scmp.eq.s32.totalorder %s14, 1
    %p46 = por %p44, %p45
    %p47 = scmp.ne.s32.totalorder %s36, %s37
    %p48 = scmp.eq.s32.totalorder %s14, 0
    %p49 = por %p47, %p48
    %p50 = scmp.ne.s32.totalorder %s36, %s37
    %p51 = scmp.eq.s32.totalorder %s15, 1
    %p52 = por %p50, %p51
    %p54 = scmp.ne.s32.totalorder %s37, %s53
    %p55 = scmp.eq.s32.totalorder %s15, 0
    %p56 = por %p54, %p55
    %s58 = sadd.s32 %s57, 1
    %p61 = scmp.eq.s32.totalorder %s9, 1
    %p62 = scmp.ne.s32.totalorder %s57, %s59
    %p63 = scmp.eq.s32.totalorder %s9, 0
    %p64 = por %p62, %p63
    %p65 = scmp.ne.s32.totalorder %s57, %s59
    %p66 = scmp.eq.s32.totalorder %s14, 1
    %p67 = por %p65, %p66
    %p68 = scmp.ne.s32.totalorder %s59, %s60
    %p69 = scmp.eq.s32.totalorder %s14, 0
    %p70 = por %p68, %p69
    %p71 = scmp.ne.s32.totalorder %s59, %s60
    %p72 = scmp.eq.s32.totalorder %s15, 1
    %p73 = por %p71, %p72
    %p75 = scmp.ne.s32.totalorder %s60, %s74
    %p76 = scmp.eq.s32.totalorder %s15, 0
    %p77 = por %p75, %p76
    %s79 = sadd.s32 %s78, 1
    %p82 = scmp.eq.s32.totalorder %s9, 1
    %p83 = scmp.ne.s32.totalorder %s78, %s80
    %p84 = scmp.eq.s32.totalorder %s9, 0
    %p85 = por %p83, %p84
    %p86 = scmp.ne.s32.totalorder %s78, %s80
    %p87 = scmp.eq.s32.totalorder %s14, 1
    %p88 = por %p86, %p87
    %p89 = scmp.ne.s32.totalorder %s80, %s81
    %p90 = scmp.eq.s32.totalorder %s14, 0
    %p91 = por %p89, %p90
    %p92 = scmp.ne.s32.totalorder %s80, %s81
    %p93 = scmp.eq.s32.totalorder %s15, 1
    %p94 = por %p92, %p93
    %p96 = scmp.ne.s32.totalorder %s81, %s95
    %p97 = scmp.eq.s32.totalorder %s15, 0
    %p98 = por %p96, %p97
    %s99 = ssub.s32 %s16, %s28
    %s100 = ssub.s32 %s17, %s24
    %s101 = sor.u32 %s99, %s100
    %p102 = scmp.eq.s32.totalorder %s101, 0
    %s104 = sadd.s32 %s103, 1
    %s105 = scalar_select %p102, %s103, %s104
    %p108 = pneg %p102
    %p109 = scmp.eq.s32.totalorder %s9, 1
    %p110 = por %p108, %p109
    %p111 = scmp.ne.s32.totalorder %s103, %s106
    %p112 = scmp.eq.s32.totalorder %s9, 0
    %p113 = por %p111, %p112
    %p114 = scmp.ne.s32.totalorder %s103, %s106
    %p115 = scmp.eq.s32.totalorder %s14, 1
    %p116 = por %p114, %p115
    %p117 = scmp.ne.s32.totalorder %s106, %s107
    %p118 = scmp.eq.s32.totalorder %s14, 0
    %p119 = por %p117, %p118
    %p120 = scmp.ne.s32.totalorder %s106, %s107
    %p121 = scmp.eq.s32.totalorder %s15, 1
    %p122 = por %p120, %p121
    %p124 = scmp.ne.s32.totalorder %s107, %s123
    %p125 = scmp.eq.s32.totalorder %s15, 0
    %p126 = por %p124, %p125
    %p127 = scmp.le.s32.totalorder 1, %s9
    %p128 = scmp.lt.s32.totalorder %s9, 3
    %p129 = pnand %p127, %p128
    %p130 = pneg %p129
    // Predicated region
    $region9: #{_lambda_.4} parent=5 // pred_check
      _
    $region10: #{_lambda_.4} parent=5 // pred_check_branch
      %132 = sbr.rel (%p129) target = $region12
    $region11: #{_lambda_.4} parent=5 // pred_region
      %s133 = ssub.s32 %s9, 1
      // Predicated region
      $region13: #{_lambda_.4} parent=11 // pred_check
        %p134 = pneg %p70
      $region14: #{_lambda_.4} parent=11 // pred_check_branch
        %136 = sbr.rel (%p134) target = $region16
      $region15: #{_lambda_.4} parent=11 // pred_region
        _
      $region16: #{_lambda_.4} parent=11 // pred_fallthru
        _
      // Predicated region
      $region17: #{_lambda_.4} parent=11 // pred_check
        %p137 = pneg %p91
      $region18: #{_lambda_.4} parent=11 // pred_check_branch
        %139 = sbr.rel (%p137) target = $region20
      $region19: #{_lambda_.4} parent=11 // pred_region
        _
      $region20: #{_lambda_.4} parent=11 // pred_fallthru
        _
    $region12: #{_lambda_.4} parent=5 // pred_fallthru
      _
    %p140 = scmp.lt.s32.totalorder %s9, 2
    // Predicated region
    $region21: #{_lambda_.4} parent=5 // pred_check
      %p141 = pneg %p140
    $region22: #{_lambda_.4} parent=5 // pred_check_branch
      %143 = sbr.rel (%p141) target = $region24
    $region23: #{_lambda_.4} parent=5 // pred_region
      // Predicated region
      $region25: #{_lambda_.4} parent=23 // pred_check
        %p144 = pneg %p43
      $region26: #{_lambda_.4} parent=23 // pred_check_branch
        %146 = sbr.rel (%p144) target = $region28
      $region27: #{_lambda_.4} parent=23 // pred_region
        %s147 = smul.u32 2, %s17
        %p148 = scmp.lt.s32.totalorder %s16, 1
        %s149 = scalar_select %p148, %s16, 1
        %p150 = scmp.lt.s32.totalorder %s147, 1
        %s151 = scalar_select %p150, %s147, 1
        %s152 = smul.addr %s149, 16
        %s153 = sadd.s32 %s151, %s152
        %s154 = smul.addr %s153, 4
        %s155 = scalar_lea.vmem %s0, %s154
        %s156 = smul.u32 2, %s17
      $region28: #{_lambda_.4} parent=23 // pred_fallthru
        _
    $region24: #{_lambda_.4} parent=5 // pred_fallthru
      _
    %p157 = scmp.le.s32.totalorder 1, %s9
    %p158 = scmp.lt.s32.totalorder %s9, 3
    %p159 = pnand %p157, %p158
    %p160 = pneg %p159
    // Predicated region
    $region29: #{_lambda_.4} parent=5 // pred_check
      _
    $region30: #{_lambda_.4} parent=5 // pred_check_branch
      %162 = sbr.rel (%p159) target = $region32
    $region31: #{_lambda_.4} parent=5 // pred_region
      %s163 = ssub.s32 %s9, 1
      %s164 = smul.u32 2, %s19
      %p165 = scmp.lt.s32.totalorder %s18, 1
      %s166 = scalar_select %p165, %s18, 1
      %p167 = scmp.lt.s32.totalorder %s164, 1
      %s168 = scalar_select %p167, %s164, 1
      %s169 = smul.addr %s166, 16
      %s170 = sadd.s32 %s168, %s169
      %s171 = smul.addr %s170, 4
      %s172 = scalar_lea.vmem %s0, %s171
      %p173 = pneg %p49
      %p174 = pneg %p46
      %p175 = pneg %p70
      %p176 = pneg %p67
      %p177 = pneg %p91
      %p178 = pneg %p88
      %p179 = pneg %p119
      %p180 = pneg %p116
      %s181 = smul.u32 2, %s19
      %p182 = scmp.lt.s32.totalorder %s18, 1
      %s183 = scalar_select %p182, %s18, 1
      %p184 = scmp.lt.s32.totalorder %s181, 1
      %s185 = scalar_select %p184, %s181, 1
      %s186 = smul.addr %s183, 4
      %s187 = sadd.s32 %s185, %s186
      %s188 = smul.addr %s187, 8
      %s189 = scalar_lea.vmem %s3, %s188
      %s190 = smul.u32 2, %s19
      %p191 = scmp.lt.s32.totalorder %s18, 1
      %s192 = scalar_select %p191, %s18, 1
      %p193 = scmp.lt.s32.totalorder %s190, 1
      %s194 = scalar_select %p193, %s190, 1
      %s195 = smul.addr %s192, 16
      %s196 = sadd.s32 %s194, %s195
      %s197 = smul.addr %s196, 4
      %s198 = scalar_lea.vmem %s0, %s197
      %s199 = smul.u32 2, %s19
      %s200 = smul.u32 2, %s19
      %p201 = scmp.lt.s32.totalorder %s18, 1
      %s202 = scalar_select %p201, %s18, 1
      %p203 = scmp.lt.s32.totalorder %s200, 1
      %s204 = scalar_select %p203, %s200, 1
      %s205 = smul.addr %s202, 4
      %s206 = sadd.s32 %s204, %s205
      %s207 = smul.addr %s206, 8
      %s208 = scalar_lea.vmem %s3, %s207
      %s209 = smul.u32 2, %s19
      %v211 = vld [vmem:[%s1] sm:$0xf]
      %v212 = vld [vmem:[%s1 + $0x4] sm:$0xf]
      %v213 = vld [vmem:[%s198] sm:$0xff]
      %v214 = vld [vmem:[%s198 + $0x8] sm:$0xff]
      %v215 = vld [vmem:[%s198 + $0x10] sm:$0xff]
      %v216 = vld [vmem:[%s198 + $0x18] sm:$0xff]
      %v217 = vld [vmem:[%s198 + $0x20] sm:$0xff]
      %v218 = vld [vmem:[%s198 + $0x28] sm:$0xff]
      %v219 = vld [vmem:[%s198 + $0x30] sm:$0xff]
      %v220 = vld [vmem:[%s198 + $0x38] sm:$0xff]
      %v221 = vld [vmem:[%s2] sm:$0xff]
      %v222 = vld [vmem:[%s2 + $0x8] sm:$0xff]
      %224 = vset.pattern.permute.xlu0 0
      %225 = vperm.xlu0 %224, %v221
      %v226 = vpop.permute.xlu0 %225
      %229 = vset.pattern.permute.xlu0 0
      %230 = vperm.xlu0 %229, %v222
      %v231 = vpop.permute.xlu0 %230
      %v235 = vunpack.c.l.b16 %v211
      %v236 = vunpack.c.l.b16 %v212
      %v237 = vpack.c.b16 %v236, %v235
      %v246 = vunpack.c.l.b16 %v213
      %v247 = vunpack.c.h.b16 %v213
      %v248 = vunpack.c.l.b16 %v214
      %v249 = vunpack.c.h.b16 %v214
      %v250 = vunpack.c.l.b16 %v215
      %v251 = vunpack.c.h.b16 %v215
      %v252 = vunpack.c.l.b16 %v216
      %v253 = vunpack.c.h.b16 %v216
      %v254 = vunpack.c.l.b16 %v217
      %v255 = vunpack.c.h.b16 %v217
      %v256 = vunpack.c.l.b16 %v218
      %v257 = vunpack.c.h.b16 %v218
      %v258 = vunpack.c.l.b16 %v219
      %v259 = vunpack.c.h.b16 %v219
      %v260 = vunpack.c.l.b16 %v220
      %v261 = vunpack.c.h.b16 %v220
      %v262 = vpack.c.b16 %v248, %v246
      %v263 = vpack.c.b16 %v249, %v247
      %v264 = vpack.c.b16 %v252, %v250
      %v265 = vpack.c.b16 %v253, %v251
      %v266 = vpack.c.b16 %v256, %v254
      %v267 = vpack.c.b16 %v257, %v255
      %v268 = vpack.c.b16 %v260, %v258
      %v269 = vpack.c.b16 %v261, %v259
      %vm278 = vcmask 523264
      %v280 = vsel %vm278, %v237, 0
      %282 = vmatprep.subr.bf16.mxu0 0
      %283 = vmatpush1.bf16.msra.mxu0 0
      %284 = vmatprep.subr.bf16.mxu0 0
      %285 = vmatpush1.bf16.msra.mxu0 0
      %286 = vmatprep.subr.bf16.mxu0 0
      %287 = vmatpush1.bf16.msra.mxu0 0
      %288 = vmatprep.subr.bf16.mxu0 0
      %289 = vmatpush1.bf16.msra.mxu0 0
      %290 = vmatprep.subr.bf16.mxu0 %v269
      %291 = vmatpush1.bf16.msra.mxu0 %v268
      %292 = vmatprep.subr.bf16.mxu0 %v267
      %293 = vmatpush1.bf16.msra.mxu0 %v266
      %294 = vmatprep.subr.bf16.mxu0 %v265
      %295 = vmatpush1.bf16.msra.mxu0 %v264
      %296 = vmatprep.subr.bf16.mxu0 %v263
      %297 = vmatpush1.bf16.msra.mxu0 %v262
      %298 = vmatprep.subr.bf16.mxu0 0
      %299 = vmatpush2.bf16.msra.mxu0 0
      %300 = vmatprep.subr.bf16.mxu0 0
      %301 = vmatpush2.bf16.msra.mxu0 0
      %302 = vmatprep.subr.bf16.mxu0 0
      %303 = vmatpush2.bf16.msra.mxu0 0
      %304 = vmatprep.subr.bf16.mxu0 0
      %305 = vmatpush2.bf16.msra.mxu0 0
      %306 = vmatprep.subr.bf16.mxu0 0
      %307 = vmatpush2.bf16.msra.mxu0 0
      %308 = vmatprep.subr.bf16.mxu0 0
      %309 = vmatpush2.bf16.msra.mxu0 0
      %310 = vmatprep.subr.bf16.mxu0 0
      %311 = vmatpush2.bf16.msra.mxu0 0
      %312 = vmatprep.subr.bf16.mxu0 0
      %313 = vmatpush2.bf16.msra.mxu0 0
      %314 = vmatprep.mubr.bf16.mxu0 0
      %315 = vmatmul.mubr.bf16.gmra.mxu0 %v280
      %v316 = vpop.f32.mrf.mxu0
      %v317 = vadd.f32 %v226, %v316
      %v318 = vpop.f32.mrf.mxu0
      %v319 = vadd.f32 %v226, %v318
      %v320 = vpop.f32.mrf.mxu0
      %v321 = vadd.f32 %v231, %v320
      %v322 = vpop.f32.mrf.mxu0
      %v323 = vadd.f32 %v231, %v322
      %324 = vdwg.mxu0
      %v325 = vmax.f32 %v317, 0.0
      %v326 = vmax.f32 %v319, 0.0
      %v327 = vmax.f32 %v321, 0.0
      %v328 = vmax.f32 %v323, 0.0
      %329 = vst [vmem:[%s208] sm:$0xff] %v325
      %330 = vst [vmem:[%s208 + $0x8] sm:$0xff] %v326
      %331 = vst [vmem:[%s208 + $0x10] sm:$0xff] %v327
      %332 = vst [vmem:[%s208 + $0x18] sm:$0xff] %v328
      %s333 = smul.u32 2, %s19
      %p334 = scmp.lt.s32.totalorder %s18, 1
      %s335 = scalar_select %p334, %s18, 1
      %p336 = scmp.lt.s32.totalorder %s333, 1
      %s337 = scalar_select %p336, %s333, 1
      %s338 = smul.addr %s335, 4
      %s339 = sadd.s32 %s337, %s338
      %s340 = smul.addr %s339, 8
      %s341 = scalar_lea.vmem %s3, %s340
      // Predicated region
      $region33: #{_lambda_.4} parent=31 // pred_check
        %p342 = pneg %p116
      $region34: #{_lambda_.4} parent=31 // pred_check_branch
        %344 = sbr.rel (%p342) target = $region36
      $region35: #{_lambda_.4} parent=31 // pred_region
        %s345 = smul.u32 2, %s19
      $region36: #{_lambda_.4} parent=31 // pred_fallthru
        _
    $region32: #{_lambda_.4} parent=5 // pred_fallthru
      _
    %p346 = scmp.le.s32.totalorder 2, %s9
    // Predicated region
    $region37: #{_lambda_.4} parent=5 // pred_check
      %p347 = pneg %p346
    $region38: #{_lambda_.4} parent=5 // pred_check_branch
      %349 = sbr.rel (%p347) target = $region40
    $region39: #{_lambda_.4} parent=5 // pred_region
      %s350 = ssub.s32 %s9, 2
      // Predicated region
      $region41: #{_lambda_.4} parent=39 // pred_check
        %p351 = pneg %p122
      $region42: #{_lambda_.4} parent=39 // pred_check_branch
        %353 = sbr.rel (%p351) target = $region44
      $region43: #{_lambda_.4} parent=39 // pred_region
        %s354 = smul.u32 2, %s21
        %p355 = scmp.lt.s32.totalorder %s20, 1
        %s356 = scalar_select %p355, %s20, 1
        %p357 = scmp.lt.s32.totalorder %s354, 1
        %s358 = scalar_select %p357, %s354, 1
        %s359 = smul.addr %s356, 4
        %s360 = sadd.s32 %s358, %s359
        %s361 = smul.addr %s360, 8
        %s362 = scalar_lea.vmem %s3, %s361
      $region44: #{_lambda_.4} parent=39 // pred_fallthru
        _
    $region40: #{_lambda_.4} parent=5 // pred_fallthru
      _
  $region6: #{_lambda_.4} parent=0 // loop_footer
    %s13 = sadd.s32 1, %s9
  $region7: #{_lambda_.4} parent=0 // loop_footer_branch
    %8 = sbr.rel target = $region3
  $region8: #{_lambda_.4} parent=0 // loop_exit
    _

// kernel: _lambda_.5
$region0: #{_lambda_.5}
  #allocation0 [shape = 'u32[]', space=smem, size = 0x4, offset = 0x4, fixed_abs, tag = 'smem constant byte address 0x4 - core index']
  #allocation1 [shape = 'u32[144,128]{1,0:T(1,128)}', space=vmem, size = 0x12000, scoped, tag = 'internal scratch']
  #allocation2 [shape = 's32[1]{0}', space=sflag, size = 0x4, scoped, tag = 'scoped memory for _lambda_.5']
  #allocation3 [shape = 'u8[512]{0}', space=smem, size = 0x200, scoped, tag = 'prefetched SMEM operand 0']
  %s0 = inlined_call_operand.vmem [shape: s32[5], index: 0, kind: input, shape index: {}]
  %s1 = inlined_call_operand.vmem [shape: f32[2,5,24,128], index: 1, kind: input, shape index: {}]
  %s2 = inlined_call_operand.vmem [shape: bf16[2,33,24], index: 2, kind: input, shape index: {}]
  %s3 = inlined_call_operand.vmem [shape: f32[5,128,128], index: 3, kind: input, shape index: {}]
  %s4 = inlined_call_operand.vmem [shape: f32[2,5,16,128], index: 4, kind: input, shape index: {}]
  %s5 = inlined_call_operand.vmem [shape: f32[2,5,16,128], index: 5, kind: output, shape index: {}]
  %s6 = sld [smem:[#allocation0]]
  $region49: #{_lambda_.5} parent=0
    _
  %s8 = ssub.s32 1, %s6
  %s9 = scalar_select 0, %s8, %s6
  %s10 = sshll.u32 %s0, 4
  %s11 = int_to_ptr.vmem [resolvable:$true] %s10
  %13 = dma.vmem_to_smem %s11, 16, [#allocation3], [#allocation2]
  %14 = dma.done [#allocation2], 16
  %15 = sfence
  loop: start=0, step=1, limit=12
  $region2: #{_lambda_.5} parent=0 // loop_pre_header
    _
  $region3: #{_lambda_.5} parent=0 // loop_header
    %s17 = sphi 0, %s21
    %p18 = scmp.ge.s32.totalorder %s17, 12
    %s24 = sphi 0, %s36
    %s25 = sphi 0, %s32
    %s26 = sphi 0, %s24
    %s27 = sphi 0, %s25
    %s28 = sphi 0, %s26
    %s29 = sphi 0, %s27
    %s41 = sphi 0, %s43
    %s44 = sphi 0, %s41
    %s45 = sphi 0, %s44
    %s61 = sphi 0, %s45
    %s69 = sphi 0, %s71
    %s72 = sphi 0, %s69
    %s73 = sphi 0, %s72
    %s89 = sphi 0, %s73
    %s95 = sphi 0, %s97
    %s98 = sphi 0, %s95
    %s99 = sphi 0, %s98
    %s115 = sphi 0, %s99
    %s123 = sphi 0, %s125
    %s126 = sphi 0, %s123
    %s127 = sphi 0, %s126
    %s143 = sphi 0, %s127
    %s151 = sphi 0, %s153
    %s154 = sphi 0, %s151
    %s155 = sphi 0, %s154
    %s171 = sphi 0, %s155
  $region4: #{_lambda_.5} parent=0 // loop_header_branch
    %20 = sbr.rel (%p18) target = $region8
  $region5: #{_lambda_.5} parent=0 // loop_body
    %s22 = ssub.s32 %s17, 1
    %s23 = ssub.s32 %s17, 2
    %s30 = sadd.s32 1, %s25
    %p31 = scmp.ge.s32.totalorder %s30, 5
    %s32 = scalar_select %p31, 0, %s30
    %s33 = sadd.s32 1, %s24
    %s34 = scalar_select %p31, %s33, %s24
    %p35 = scmp.ge.s32.totalorder %s34, 2
    %s36 = scalar_select %p35, 0, %s34
    %s37 = ssub.s32 %s24, %s36
    %s38 = ssub.s32 %s25, %s32
    %s39 = sor.u32 %s37, %s38
    %p40 = scmp.eq.s32.totalorder %s39, 0
    %s42 = sadd.s32 %s41, 1
    %s43 = scalar_select %p40, %s41, %s42
    %p46 = pneg %p40
    %p47 = scmp.eq.s32.totalorder %s17, 9
    %p48 = por %p46, %p47
    %p49 = scmp.ne.s32.totalorder %s41, %s44
    %p50 = scmp.eq.s32.totalorder %s17, 0
    %p51 = por %p49, %p50
    %p52 = scmp.ne.s32.totalorder %s41, %s44
    %p53 = scmp.eq.s32.totalorder %s22, 9
    %p54 = por %p52, %p53
    %p55 = scmp.ne.s32.totalorder %s44, %s45
    %p56 = scmp.eq.s32.totalorder %s22, 0
    %p57 = por %p55, %p56
    %p58 = scmp.ne.s32.totalorder %s44, %s45
    %p59 = scmp.eq.s32.totalorder %s23, 9
    %p60 = por %p58, %p59
    %p62 = scmp.ne.s32.totalorder %s45, %s61
    %p63 = scmp.eq.s32.totalorder %s23, 0
    %p64 = por %p62, %p63
    %s65 = sld [smem:[#allocation3 + %s25]]
    %s66 = sld [smem:[#allocation3 + %s32]]
    %s67 = ssub.s32 %s65, %s66
    %p68 = scmp.eq.s32.totalorder %s67, 0
    %s70 = sadd.s32 %s69, 1
    %s71 = scalar_select %p68, %s69, %s70
    %p74 = pneg %p68
    %p75 = scmp.eq.s32.totalorder %s17, 9
    %p76 = por %p74, %p75
    %p77 = scmp.ne.s32.totalorder %s69, %s72
    %p78 = scmp.eq.s32.totalorder %s17, 0
    %p79 = por %p77, %p78
    %p80 = scmp.ne.s32.totalorder %s69, %s72
    %p81 = scmp.eq.s32.totalorder %s22, 9
    %p82 = por %p80, %p81
    %p83 = scmp.ne.s32.totalorder %s72, %s73
    %p84 = scmp.eq.s32.totalorder %s22, 0
    %p85 = por %p83, %p84
    %p86 = scmp.ne.s32.totalorder %s72, %s73
    %p87 = scmp.eq.s32.totalorder %s23, 9
    %p88 = por %p86, %p87
    %p90 = scmp.ne.s32.totalorder %s73, %s89
    %p91 = scmp.eq.s32.totalorder %s23, 0
    %p92 = por %p90, %p91
    %s93 = ssub.s32 %s25, %s32
    %p94 = scmp.eq.s32.totalorder %s93, 0
    %s96 = sadd.s32 %s95, 1
    %s97 = scalar_select %p94, %s95, %s96
    %p100 = pneg %p94
    %p101 = scmp.eq.s32.totalorder %s17, 9
    %p102 = por %p100, %p101
    %p103 = scmp.ne.s32.totalorder %s95, %s98
    %p104 = scmp.eq.s32.totalorder %s17, 0
    %p105 = por %p103, %p104
    %p106 = scmp.ne.s32.totalorder %s95, %s98
    %p107 = scmp.eq.s32.totalorder %s22, 9
    %p108 = por %p106, %p107
    %p109 = scmp.ne.s32.totalorder %s98, %s99
    %p110 = scmp.eq.s32.totalorder %s22, 0
    %p111 = por %p109, %p110
    %p112 = scmp.ne.s32.totalorder %s98, %s99
    %p113 = scmp.eq.s32.totalorder %s23, 9
    %p114 = por %p112, %p113
    %p116 = scmp.ne.s32.totalorder %s99, %s115
    %p117 = scmp.eq.s32.totalorder %s23, 0
    %p118 = por %p116, %p117
    %s119 = ssub.s32 %s24, %s36
    %s120 = ssub.s32 %s25, %s32
    %s121 = sor.u32 %s119, %s120
    %p122 = scmp.eq.s32.totalorder %s121, 0
    %s124 = sadd.s32 %s123, 1
    %s125 = scalar_select %p122, %s123, %s124
    %p128 = pneg %p122
    %p129 = scmp.eq.s32.totalorder %s17, 9
    %p130 = por %p128, %p129
    %p131 = scmp.ne.s32.totalorder %s123, %s126
    %p132 = scmp.eq.s32.totalorder %s17, 0
    %p133 = por %p131, %p132
    %p134 = scmp.ne.s32.totalorder %s123, %s126
    %p135 = scmp.eq.s32.totalorder %s22, 9
    %p136 = por %p134, %p135
    %p137 = scmp.ne.s32.totalorder %s126, %s127
    %p138 = scmp.eq.s32.totalorder %s22, 0
    %p139 = por %p137, %p138
    %p140 = scmp.ne.s32.totalorder %s126, %s127
    %p141 = scmp.eq.s32.totalorder %s23, 9
    %p142 = por %p140, %p141
    %p144 = scmp.ne.s32.totalorder %s127, %s143
    %p145 = scmp.eq.s32.totalorder %s23, 0
    %p146 = por %p144, %p145
    %s147 = ssub.s32 %s24, %s36
    %s148 = ssub.s32 %s25, %s32
    %s149 = sor.u32 %s147, %s148
    %p150 = scmp.eq.s32.totalorder %s149, 0
    %s152 = sadd.s32 %s151, 1
    %s153 = scalar_select %p150, %s151, %s152
    %p156 = pneg %p150
    %p157 = scmp.eq.s32.totalorder %s17, 9
    %p158 = por %p156, %p157
    %p159 = scmp.ne.s32.totalorder %s151, %s154
    %p160 = scmp.eq.s32.totalorder %s17, 0
    %p161 = por %p159, %p160
    %p162 = scmp.ne.s32.totalorder %s151, %s154
    %p163 = scmp.eq.s32.totalorder %s22, 9
    %p164 = por %p162, %p163
    %p165 = scmp.ne.s32.totalorder %s154, %s155
    %p166 = scmp.eq.s32.totalorder %s22, 0
    %p167 = por %p165, %p166
    %p168 = scmp.ne.s32.totalorder %s154, %s155
    %p169 = scmp.eq.s32.totalorder %s23, 9
    %p170 = por %p168, %p169
    %p172 = scmp.ne.s32.totalorder %s155, %s171
    %p173 = scmp.eq.s32.totalorder %s23, 0
    %p174 = por %p172, %p173
    %p175 = scmp.le.s32.totalorder 1, %s17
    %p176 = scmp.lt.s32.totalorder %s17, 11
    %p177 = pnand %p175, %p176
    %p178 = pneg %p177
    // Predicated region
    $region9: #{_lambda_.5} parent=5 // pred_check
      _
    $region10: #{_lambda_.5} parent=5 // pred_check_branch
      %180 = sbr.rel (%p177) target = $region12
    $region11: #{_lambda_.5} parent=5 // pred_region
      %s181 = ssub.s32 %s17, 1
    $region12: #{_lambda_.5} parent=5 // pred_fallthru
      _
    %p182 = scmp.lt.s32.totalorder %s17, 10
    // Predicated region
    $region13: #{_lambda_.5} parent=5 // pred_check
      %p183 = pneg %p182
    $region14: #{_lambda_.5} parent=5 // pred_check_branch
      %185 = sbr.rel (%p183) target = $region16
    $region15: #{_lambda_.5} parent=5 // pred_region
      // Predicated region
      $region17: #{_lambda_.5} parent=15 // pred_check
        %p186 = pneg %p51
      $region18: #{_lambda_.5} parent=15 // pred_check_branch
        %188 = sbr.rel (%p186) target = $region20
      $region19: #{_lambda_.5} parent=15 // pred_region
        %p189 = scmp.lt.s32.totalorder %s24, 1
        %s190 = scalar_select %p189, %s24, 1
        %p191 = scmp.lt.s32.totalorder %s25, 4
        %s192 = scalar_select %p191, %s25, 4
        %s193 = smul.addr %s192, 3
        %s194 = smul.addr %s190, 15
        %s195 = sadd.s32 %s193, %s194
        %s196 = smul.addr %s195, 8
        %s197 = scalar_lea.vmem %s1, %s196
      $region20: #{_lambda_.5} parent=15 // pred_fallthru
        _
      // Predicated region
      $region21: #{_lambda_.5} parent=15 // pred_check
        %p198 = pneg %p79
      $region22: #{_lambda_.5} parent=15 // pred_check_branch
        %200 = sbr.rel (%p198) target = $region24
      $region23: #{_lambda_.5} parent=15 // pred_region
        %s201 = sld [smem:[#allocation3 + %s25]]
        %p202 = scmp.lt.s32.totalorder %s201, 1
        %s203 = scalar_select %p202, %s201, 1
        %s204 = smul.addr %s203, 5
        %s205 = smul.addr %s204, 4
        %s206 = scalar_lea.vmem %s2, %s205
        %s207 = sld [smem:[#allocation3 + %s25]]
      $region24: #{_lambda_.5} parent=15 // pred_fallthru
        _
      // Predicated region
      $region25: #{_lambda_.5} parent=15 // pred_check
        %p208 = pneg %p105
      $region26: #{_lambda_.5} parent=15 // pred_check_branch
        %210 = sbr.rel (%p208) target = $region28
      $region27: #{_lambda_.5} parent=15 // pred_region
        %p211 = scmp.lt.s32.totalorder %s25, 4
        %s212 = scalar_select %p211, %s25, 4
        %s213 = smul.addr %s212, 16
        %s214 = smul.addr %s213, 8
        %s215 = scalar_lea.vmem %s3, %s214
      $region28: #{_lambda_.5} parent=15 // pred_fallthru
        _
      // Predicated region
      $region29: #{_lambda_.5} parent=15 // pred_check
        %p216 = pneg %p133
      $region30: #{_lambda_.5} parent=15 // pred_check_branch
        %218 = sbr.rel (%p216) target = $region32
      $region31: #{_lambda_.5} parent=15 // pred_region
        %p219 = scmp.lt.s32.totalorder %s24, 1
        %s220 = scalar_select %p219, %s24, 1
        %p221 = scmp.lt.s32.totalorder %s25, 4
        %s222 = scalar_select %p221, %s25, 4
        %s223 = smul.addr %s222, 2
        %s224 = smul.addr %s220, 10
        %s225 = sadd.s32 %s223, %s224
        %s226 = smul.addr %s225, 8
        %s227 = scalar_lea.vmem %s4, %s226
      $region32: #{_lambda_.5} parent=15 // pred_fallthru
        _
    $region16: #{_lambda_.5} parent=5 // pred_fallthru
      _
    %p228 = scmp.le.s32.totalorder 1, %s17
    %p229 = scmp.lt.s32.totalorder %s17, 11
    %p230 = pnand %p228, %p229
    %p231 = pneg %p230
    // Predicated region
    $region33: #{_lambda_.5} parent=5 // pred_check
      _
    $region34: #{_lambda_.5} parent=5 // pred_check_branch
      %233 = sbr.rel (%p230) target = $region36
    $region35: #{_lambda_.5} parent=5 // pred_region
      %s234 = ssub.s32 %s17, 1
      %p235 = scmp.lt.s32.totalorder %s26, 1
      %s236 = scalar_select %p235, %s26, 1
      %p237 = scmp.lt.s32.totalorder %s27, 4
      %s238 = scalar_select %p237, %s27, 4
      %s239 = smul.addr %s238, 3
      %s240 = smul.addr %s236, 15
      %s241 = sadd.s32 %s239, %s240
      %s242 = smul.addr %s241, 8
      %s243 = scalar_lea.vmem %s1, %s242
      %p244 = pneg %p57
      %p245 = pneg %p54
      %s246 = sld [smem:[#allocation3 + %s27]]
      %p247 = scmp.lt.s32.totalorder %s246, 1
      %s248 = scalar_select %p247, %s246, 1
      %s249 = smul.addr %s248, 5
      %s250 = smul.addr %s249, 4
      %s251 = scalar_lea.vmem %s2, %s250
      %p252 = pneg %p85
      %p253 = pneg %p82
      %p254 = scmp.lt.s32.totalorder %s27, 4
      %s255 = scalar_select %p254, %s27, 4
      %s256 = smul.addr %s255, 16
      %s257 = smul.addr %s256, 8
      %s258 = scalar_lea.vmem %s3, %s257
      %p259 = pneg %p111
      %p260 = pneg %p108
      %p261 = scmp.lt.s32.totalorder %s26, 1
      %s262 = scalar_select %p261, %s26, 1
      %p263 = scmp.lt.s32.totalorder %s27, 4
      %s264 = scalar_select %p263, %s27, 4
      %s265 = smul.addr %s264, 2
      %s266 = smul.addr %s262, 10
      %s267 = sadd.s32 %s265, %s266
      %s268 = smul.addr %s267, 8
      %s269 = scalar_lea.vmem %s4, %s268
      %p270 = pneg %p139
      %p271 = pneg %p136
      %p272 = pneg %p167
      %p273 = pneg %p164
      %p274 = scmp.lt.s32.totalorder %s26, 1
      %s275 = scalar_select %p274, %s26, 1
      %p276 = scmp.lt.s32.totalorder %s27, 4
      %s277 = scalar_select %p276, %s27, 4
      %s278 = smul.addr %s277, 2
      %s279 = smul.addr %s275, 10
      %s280 = sadd.s32 %s278, %s279
      %s281 = smul.addr %s280, 8
      %s282 = scalar_lea.vmem %s5, %s281
      %p283 = scmp.lt.s32.totalorder %s26, 1
      %s284 = scalar_select %p283, %s26, 1
      %p285 = scmp.lt.s32.totalorder %s27, 4
      %s286 = scalar_select %p285, %s27, 4
      %s287 = smul.addr %s286, 3
      %s288 = smul.addr %s284, 15
      %s289 = sadd.s32 %s287, %s288
      %s290 = smul.addr %s289, 8
      %s291 = scalar_lea.vmem %s1, %s290
      %s292 = sld [smem:[#allocation3 + %s27]]
      %p293 = scmp.lt.s32.totalorder %s292, 1
      %s294 = scalar_select %p293, %s292, 1
      %s295 = smul.addr %s294, 5
      %s296 = smul.addr %s295, 4
      %s297 = scalar_lea.vmem %s2, %s296
      %s298 = sld [smem:[#allocation3 + %s27]]
      %p299 = scmp.lt.s32.totalorder %s27, 4
      %s300 = scalar_select %p299, %s27, 4
      %s301 = smul.addr %s300, 16
      %s302 = smul.addr %s301, 8
      %s303 = scalar_lea.vmem %s3, %s302
      %p304 = scmp.lt.s32.totalorder %s26, 1
      %s305 = scalar_select %p304, %s26, 1
      %p306 = scmp.lt.s32.totalorder %s27, 4
      %s307 = scalar_select %p306, %s27, 4
      %s308 = smul.addr %s307, 2
      %s309 = smul.addr %s305, 10
      %s310 = sadd.s32 %s308, %s309
      %s311 = smul.addr %s310, 8
      %s312 = scalar_lea.vmem %s4, %s311
      %p313 = scmp.lt.s32.totalorder %s26, 1
      %s314 = scalar_select %p313, %s26, 1
      %p315 = scmp.lt.s32.totalorder %s27, 4
      %s316 = scalar_select %p315, %s27, 4
      %s317 = smul.addr %s316, 2
      %s318 = smul.addr %s314, 10
      %s319 = sadd.s32 %s317, %s318
      %s320 = smul.addr %s319, 8
      %s321 = scalar_lea.vmem %s5, %s320
      %v323 = vld [vmem:[%s291] sm:$0xff]
      %v324 = vld [vmem:[%s291 + $0x8] sm:$0xff]
      %v325 = vld [vmem:[%s291 + $0x10] sm:$0xff]
      %v326 = vld [vmem:[%s297] sm:$0xf]
      %v327 = vld [vmem:[%s297 + $0x4] sm:$0xf]
      %v328 = vld [vmem:[%s297 + $0x8] sm:$0xf]
      %v329 = vld [vmem:[%s297 + $0xc] sm:$0xf]
      %v330 = vld [vmem:[%s297 + $0x10] sm:$0x1]
      %v331 = vpack.c.bf16 %v324, %v323
      %v332 = vpack.c.bf16 %v325, %v325
      %v338 = vunpack.c.l.b16 %v326
      %v339 = vunpack.c.l.b16 %v327
      %v340 = vunpack.c.l.b16 %v328
      %v341 = vunpack.c.l.b16 %v329
      %v342 = vunpack.c.l.b16 %v330
      %v343 = vpack.c.b16 %v339, %v338
      %v344 = vpack.c.b16 %v341, %v340
      %v345 = vpack.c.b16 %v342, %v342
      %vm346 = vcmask 195584
      %v348 = vsel %vm346, %v343, 0
      %v351 = vsel %vm346, %v344, 0
      %v354 = vsel %vm346, %v345, 0
      %vm356 = vcmask 1043456
      %v358 = vsel %vm356, %v332, 0
      %360 = vmatprep.subr.bf16.mxu0 0
      %361 = vmatpush1.bf16.msra.mxu0 0
      %362 = vmatprep.subr.bf16.mxu0 0
      %363 = vmatpush1.bf16.msra.mxu0 0
      %364 = vmatprep.subr.bf16.mxu0 0
      %365 = vmatpush1.bf16.msra.mxu0 0
      %366 = vmatprep.subr.bf16.mxu0 0
      %367 = vmatpush1.bf16.msra.mxu0 0
      %368 = vmatprep.subr.bf16.mxu0 0
      %369 = vmatpush1.bf16.msra.mxu0 0
      %370 = vmatprep.subr.bf16.mxu0 0
      %371 = vmatpush1.bf16.msra.mxu0 0
      %372 = vmatprep.subr.bf16.mxu0 0
      %373 = vmatpush1.bf16.msra.mxu0 %v358
      %374 = vmatprep.subr.bf16.mxu0 0
      %375 = vmatpush1.bf16.msra.mxu0 %v331
      %376 = vmatprep.subr.bf16.mxu0 0
      %377 = vmatpush2.bf16.msra.mxu0 0
      %378 = vmatprep.subr.bf16.mxu0 0
      %379 = vmatpush2.bf16.msra.mxu0 0
      %380 = vmatprep.subr.bf16.mxu0 0
      %381 = vmatpush2.bf16.msra.mxu0 0
      %382 = vmatprep.subr.bf16.mxu0 0
      %383 = vmatpush2.bf16.msra.mxu0 0
      %384 = vmatprep.subr.bf16.mxu0 0
      %385 = vmatpush2.bf16.msra.mxu0 0
      %386 = vmatprep.subr.bf16.mxu0 0
      %387 = vmatpush2.bf16.msra.mxu0 0
      %388 = vmatprep.subr.bf16.mxu0 0
      %389 = vmatpush2.bf16.msra.mxu0 0
      %390 = vmatprep.subr.bf16.mxu0 0
      %391 = vmatpush2.bf16.msra.mxu0 0
      %392 = vmatprep.mubr.bf16.mxu0 0
      %393 = vmatmul.mubr.bf16.gmra.mxu0 %v348
      %v394 = vpop.f32.mrf.mxu0
      %v395 = vadd.f32 0.0, %v394
      %v396 = vpop.f32.mrf.mxu0
      %v397 = vpop.f32.mrf.mxu0
      %v398 = vadd.f32 0.0, %v397
      %v399 = vpop.f32.mrf.mxu0
      %400 = vmatprep.mubr.bf16.mxu0 0
      %401 = vmatmul.mubr.bf16.gmra.mxu0 %v351
      %v402 = vpop.f32.mrf.mxu0
      %v403 = vadd.f32 0.0, %v402
      %v404 = vpop.f32.mrf.mxu0
      %v405 = vpop.f32.mrf.mxu0
      %v406 = vadd.f32 0.0, %v405
      %v407 = vpop.f32.mrf.mxu0
      %408 = vmatprep.mubr.bf16.mxu0 0
      %409 = vmatmul.mubr.bf16.gmra.mxu0 %v354
      %v410 = vpop.f32.mrf.mxu0
      %v411 = vadd.f32 0.0, %v410
      %v412 = vpop.f32.mrf.mxu0
      %v413 = vpop.f32.mrf.mxu0
      %v414 = vpop.f32.mrf.mxu0
      %415 = vdwg.mxu0
      %v416 = vld [vmem:[%s303] sm:$0xff]
      %v417 = vld [vmem:[%s303 + $0x8] sm:$0xff]
      %v418 = vld [vmem:[%s303 + $0x10] sm:$0xff]
      %v419 = vld [vmem:[%s303 + $0x18] sm:$0xff]
      %v420 = vld [vmem:[%s303 + $0x20] sm:$0xff]
      %v421 = vld [vmem:[%s303 + $0x28] sm:$0xff]
      %v422 = vld [vmem:[%s303 + $0x30] sm:$0xff]
      %v423 = vld [vmem:[%s303 + $0x38] sm:$0xff]
      %v424 = vld [vmem:[%s303 + $0x40] sm:$0xff]
      %v425 = vld [vmem:[%s303 + $0x48] sm:$0xff]
      %v426 = vld [vmem:[%s303 + $0x50] sm:$0xff]
      %v427 = vld [vmem:[%s303 + $0x58] sm:$0xff]
      %v428 = vld [vmem:[%s303 + $0x60] sm:$0xff]
      %v429 = vld [vmem:[%s303 + $0x68] sm:$0xff]
      %v430 = vld [vmem:[%s303 + $0x70] sm:$0xff]
      %v431 = vld [vmem:[%s303 + $0x78] sm:$0xff]
      %432 = vxpose.xlu0.b32.start [1/16] %v395, 128
      %433 = vxpose.xlu0.b32.cont [2/16] 0.0, 128
      %434 = vxpose.xlu0.b32.cont [3/16] 0.0, 128
      %435 = vxpose.xlu0.b32.cont [4/16] 0.0, 128
      %436 = vxpose.xlu0.b32.cont [5/16] 0.0, 128
      %437 = vxpose.xlu0.b32.cont [6/16] 0.0, 128
      %438 = vxpose.xlu0.b32.cont [7/16] 0.0, 128
      %439 = vxpose.xlu0.b32.cont [8/16] 0.0, 128
      %440 = vxpose.xlu0.b32.cont [9/16] 0.0, 128
      %441 = vxpose.xlu0.b32.cont [10/16] 0.0, 128
      %442 = vxpose.xlu0.b32.cont [11/16] 0.0, 128
      %443 = vxpose.xlu0.b32.cont [12/16] 0.0, 128
      %444 = vxpose.xlu0.b32.cont [13/16] 0.0, 128
      %445 = vxpose.xlu0.b32.cont [14/16] 0.0, 128
      %446 = vxpose.xlu0.b32.cont [15/16] 0.0, 128
      %447 = vxpose.xlu0.b32.end [16/16] 0.0, 128
      %v448 = vpop.trf.xlu0
      %v449 = vpop.trf.xlu0
      %v450 = vpop.trf.xlu0
      %v451 = vpop.trf.xlu0
      %v452 = vpop.trf.xlu0
      %v453 = vpop.trf.xlu0
      %v454 = vpop.trf.xlu0
      %v455 = vpop.trf.xlu0
      %v456 = vpop.trf.xlu0
      %v457 = vpop.trf.xlu0
      %v458 = vpop.trf.xlu0
      %v459 = vpop.trf.xlu0
      %v460 = vpop.trf.xlu0
      %v461 = vpop.trf.xlu0
      %v462 = vpop.trf.xlu0
      %v463 = vpop.trf.xlu0
      %vm464 = vcmask 64512
      %v466 = vsel %vm464, %v448, 0
      %v469 = vsel %vm464, %v449, 0
      %v472 = vsel %vm464, %v450, 0
      %v475 = vsel %vm464, %v451, 0
      %v478 = vsel %vm464, %v452, 0
      %v481 = vsel %vm464, %v453, 0
      %v484 = vsel %vm464, %v454, 0
      %v487 = vsel %vm464, %v455, 0
      %v490 = vsel %vm464, %v456, 0
      %v493 = vsel %vm464, %v457, 0
      %v496 = vsel %vm464, %v458, 0
      %v499 = vsel %vm464, %v459, 0
      %v502 = vsel %vm464, %v460, 0
      %v505 = vsel %vm464, %v461, 0
      %v508 = vsel %vm464, %v462, 0
      %v511 = vsel %vm464, %v463, 0
      %513 = vmatprep.subr.mxu0 0.0
      %514 = vmatpush1.msra.mxu0 0.0
      %515 = vmatprep.subr.mxu0 0.0
      %516 = vmatpush1.msra.mxu0 0.0
      %517 = vmatprep.subr.mxu0 0.0
      %518 = vmatpush1.msra.mxu0 0.0
      %519 = vmatprep.subr.mxu0 0.0
      %520 = vmatpush1.msra.mxu0 0.0
      %521 = vmatprep.subr.mxu0 0.0
      %522 = vmatpush1.msra.mxu0 0.0
      %523 = vmatprep.subr.mxu0 0.0
      %524 = vmatpush1.msra.mxu0 0.0
      %525 = vmatprep.subr.mxu0 0.0
      %526 = vmatpush1.msra.mxu0 0.0
      %527 = vmatprep.subr.mxu0 0.0
      %528 = vmatpush1.msra.mxu0 0.0
      %529 = vmatprep.subr.mxu0 0.0
      %530 = vmatpush1.msra.mxu0 0.0
      %531 = vmatprep.subr.mxu0 0.0
      %532 = vmatpush1.msra.mxu0 0.0
      %533 = vmatprep.subr.mxu0 0.0
      %534 = vmatpush1.msra.mxu0 0.0
      %535 = vmatprep.subr.mxu0 0.0
      %536 = vmatpush1.msra.mxu0 0.0
      %537 = vmatprep.subr.mxu0 0.0
      %538 = vmatpush1.msra.mxu0 0.0
      %539 = vmatprep.subr.mxu0 0.0
      %540 = vmatpush1.msra.mxu0 0.0
      %541 = vmatprep.subr.mxu0 0.0
      %542 = vmatpush1.msra.mxu0 0.0
      %543 = vmatprep.subr.mxu0 0.0
      %544 = vmatpush1.msra.mxu0 %v398
      %545 = vmatprep.subr.mxu0 0.0
      %546 = vmatpush2.msra.mxu0 0.0
      %547 = vmatprep.subr.mxu0 0.0
      %548 = vmatpush2.msra.mxu0 0.0
      %549 = vmatprep.subr.mxu0 0.0
      %550 = vmatpush2.msra.mxu0 0.0
      %551 = vmatprep.subr.mxu0 0.0
      %552 = vmatpush2.msra.mxu0 0.0
      %553 = vmatprep.subr.mxu0 0.0
      %554 = vmatpush2.msra.mxu0 0.0
      %555 = vmatprep.subr.mxu0 0.0
      %556 = vmatpush2.msra.mxu0 0.0
      %557 = vmatprep.subr.mxu0 0.0
      %558 = vmatpush2.msra.mxu0 0.0
      %559 = vmatprep.subr.mxu0 0.0
      %560 = vmatpush2.msra.mxu0 0.0
      %561 = vmatprep.subr.mxu0 0.0
      %562 = vmatpush2.msra.mxu0 0.0
      %563 = vmatprep.subr.mxu0 0.0
      %564 = vmatpush2.msra.mxu0 0.0
      %565 = vmatprep.subr.mxu0 0.0
      %566 = vmatpush2.msra.mxu0 0.0
      %567 = vmatprep.subr.mxu0 0.0
      %568 = vmatpush2.msra.mxu0 0.0
      %569 = vmatprep.subr.mxu0 0.0
      %570 = vmatpush2.msra.mxu0 0.0
      %571 = vmatprep.subr.mxu0 0.0
      %572 = vmatpush2.msra.mxu0 0.0
      %573 = vmatprep.subr.mxu0 0.0
      %574 = vmatpush2.msra.mxu0 0.0
      %575 = vmatprep.subr.mxu0 0.0
      %576 = vmatpush2.msra.mxu0 0.0
      %577 = vmatprep.mubr.f32.mxu0 0.0
      %578 = vmatmul.mubr.f32.gmra.mxu0 %v466
      %v579 = vpop.f32.mrf.mxu0
      %v580 = vadd.f32 %v416, %v579
      %v581 = vpop.f32.mrf.mxu0
      %582 = vmatprep.mubr.f32.mxu0 0.0
      %583 = vmatmul.mubr.f32.gmra.mxu0 %v469
      %v584 = vpop.f32.mrf.mxu0
      %v585 = vadd.f32 %v417, %v584
      %v586 = vpop.f32.mrf.mxu0
      %587 = vmatprep.mubr.f32.mxu0 0.0
      %588 = vmatmul.mubr.f32.gmra.mxu0 %v472
      %v589 = vpop.f32.mrf.mxu0
      %v590 = vadd.f32 %v418, %v589
      %v591 = vpop.f32.mrf.mxu0
      %592 = vmatprep.mubr.f32.mxu0 0.0
      %593 = vmatmul.mubr.f32.gmra.mxu0 %v475
      %v594 = vpop.f32.mrf.mxu0
      %v595 = vadd.f32 %v419, %v594
      %v596 = vpop.f32.mrf.mxu0
      %597 = vmatprep.mubr.f32.mxu0 0.0
      %598 = vmatmul.mubr.f32.gmra.mxu0 %v478
      %v599 = vpop.f32.mrf.mxu0
      %v600 = vadd.f32 %v420, %v599
      %v601 = vpop.f32.mrf.mxu0
      %602 = vmatprep.mubr.f32.mxu0 0.0
      %603 = vmatmul.mubr.f32.gmra.mxu0 %v481
      %v604 = vpop.f32.mrf.mxu0
      %v605 = vadd.f32 %v421, %v604
      %v606 = vpop.f32.mrf.mxu0
      %607 = vmatprep.mubr.f32.mxu0 0.0
      %608 = vmatmul.mubr.f32.gmra.mxu0 %v484
      %v609 = vpop.f32.mrf.mxu0
      %v610 = vadd.f32 %v422, %v609
      %v611 = vpop.f32.mrf.mxu0
      %612 = vmatprep.mubr.f32.mxu0 0.0
      %613 = vmatmul.mubr.f32.gmra.mxu0 %v487
      %v614 = vpop.f32.mrf.mxu0
      %v615 = vadd.f32 %v423, %v614
      %v616 = vpop.f32.mrf.mxu0
      %617 = vmatprep.mubr.f32.mxu0 0.0
      %618 = vmatmul.mubr.f32.gmra.mxu0 %v490
      %v619 = vpop.f32.mrf.mxu0
      %v620 = vadd.f32 %v424, %v619
      %v621 = vpop.f32.mrf.mxu0
      %622 = vmatprep.mubr.f32.mxu0 0.0
      %623 = vmatmul.mubr.f32.gmra.mxu0 %v493
      %v624 = vpop.f32.mrf.mxu0
      %v625 = vadd.f32 %v425, %v624
      %v626 = vpop.f32.mrf.mxu0
      %627 = vmatprep.mubr.f32.mxu0 0.0
      %628 = vmatmul.mubr.f32.gmra.mxu0 %v496
      %v629 = vpop.f32.mrf.mxu0
      %v630 = vadd.f32 %v426, %v629
      %v631 = vpop.f32.mrf.mxu0
      %632 = vmatprep.mubr.f32.mxu0 0.0
      %633 = vmatmul.mubr.f32.gmra.mxu0 %v499
      %v634 = vpop.f32.mrf.mxu0
      %v635 = vadd.f32 %v427, %v634
      %v636 = vpop.f32.mrf.mxu0
      %637 = vmatprep.mubr.f32.mxu0 0.0
      %638 = vmatmul.mubr.f32.gmra.mxu0 %v502
      %v639 = vpop.f32.mrf.mxu0
      %v640 = vadd.f32 %v428, %v639
      %v641 = vpop.f32.mrf.mxu0
      %642 = vmatprep.mubr.f32.mxu0 0.0
      %643 = vmatmul.mubr.f32.gmra.mxu0 %v505
      %v644 = vpop.f32.mrf.mxu0
      %v645 = vadd.f32 %v429, %v644
      %v646 = vpop.f32.mrf.mxu0
      %647 = vmatprep.mubr.f32.mxu0 0.0
      %648 = vmatmul.mubr.f32.gmra.mxu0 %v508
      %v649 = vpop.f32.mrf.mxu0
      %v650 = vadd.f32 %v430, %v649
      %v651 = vpop.f32.mrf.mxu0
      %652 = vmatprep.mubr.f32.mxu0 0.0
      %653 = vmatmul.mubr.f32.gmra.mxu0 %v511
      %v654 = vpop.f32.mrf.mxu0
      %v655 = vadd.f32 %v431, %v654
      %v656 = vpop.f32.mrf.mxu0
      %657 = vdwg.mxu0
      %658 = vmax.xlane.f32.xlu0 %v580
      %v659 = vpop.xlane.xlu0 %658
      %660 = vmax.xlane.f32.xlu0 %v585
      %v661 = vpop.xlane.xlu0 %660
      %662 = vmax.xlane.f32.xlu0 %v590
      %v663 = vpop.xlane.xlu0 %662
      %664 = vmax.xlane.f32.xlu0 %v595
      %v665 = vpop.xlane.xlu0 %664
      %666 = vmax.xlane.f32.xlu0 %v600
      %v667 = vpop.xlane.xlu0 %666
      %668 = vmax.xlane.f32.xlu0 %v605
      %v669 = vpop.xlane.xlu0 %668
      %670 = vmax.xlane.f32.xlu0 %v610
      %v671 = vpop.xlane.xlu0 %670
      %672 = vmax.xlane.f32.xlu0 %v615
      %v673 = vpop.xlane.xlu0 %672
      %674 = vmax.xlane.f32.xlu0 %v620
      %v675 = vpop.xlane.xlu0 %674
      %676 = vmax.xlane.f32.xlu0 %v625
      %v677 = vpop.xlane.xlu0 %676
      %678 = vmax.xlane.f32.xlu0 %v630
      %v679 = vpop.xlane.xlu0 %678
      %680 = vmax.xlane.f32.xlu0 %v635
      %v681 = vpop.xlane.xlu0 %680
      %682 = vmax.xlane.f32.xlu0 %v640
      %v683 = vpop.xlane.xlu0 %682
      %684 = vmax.xlane.f32.xlu0 %v645
      %v685 = vpop.xlane.xlu0 %684
      %686 = vmax.xlane.f32.xlu0 %v650
      %v687 = vpop.xlane.xlu0 %686
      %688 = vmax.xlane.f32.xlu0 %v655
      %v689 = vpop.xlane.xlu0 %688
      %v690 = vsub.f32 %v580, %v659
      %v691 = vsub.f32 %v585, %v661
      %v692 = vsub.f32 %v590, %v663
      %v693 = vsub.f32 %v595, %v665
      %v694 = vsub.f32 %v600, %v667
      %v695 = vsub.f32 %v605, %v669
      %v696 = vsub.f32 %v610, %v671
      %v697 = vsub.f32 %v615, %v673
      %v698 = vsub.f32 %v620, %v675
      %v699 = vsub.f32 %v625, %v677
      %v700 = vsub.f32 %v630, %v679
      %v701 = vsub.f32 %v635, %v681
      %v702 = vsub.f32 %v640, %v683
      %v703 = vsub.f32 %v645, %v685
      %v704 = vsub.f32 %v650, %v687
      %v705 = vsub.f32 %v655, %v689
      %v706 = vmul.f32 %v690, 1.442695
      %v707 = vpow.pop %v706
      %v708 = vmul.f32 %v691, 1.442695
      %v709 = vpow.pop %v708
      %v710 = vmul.f32 %v692, 1.442695
      %v711 = vpow.pop %v710
      %v712 = vmul.f32 %v693, 1.442695
      %v713 = vpow.pop %v712
      %v714 = vmul.f32 %v694, 1.442695
      %v715 = vpow.pop %v714
      %v716 = vmul.f32 %v695, 1.442695
      %v717 = vpow.pop %v716
      %v718 = vmul.f32 %v696, 1.442695
      %v719 = vpow.pop %v718
      %v720 = vmul.f32 %v697, 1.442695
      %v721 = vpow.pop %v720
      %v722 = vmul.f32 %v698, 1.442695
      %v723 = vpow.pop %v722
      %v724 = vmul.f32 %v699, 1.442695
      %v725 = vpow.pop %v724
      %v726 = vmul.f32 %v700, 1.442695
      %v727 = vpow.pop %v726
      %v728 = vmul.f32 %v701, 1.442695
      %v729 = vpow.pop %v728
      %v730 = vmul.f32 %v702, 1.442695
      %v731 = vpow.pop %v730
      %v732 = vmul.f32 %v703, 1.442695
      %v733 = vpow.pop %v732
      %v734 = vmul.f32 %v704, 1.442695
      %v735 = vpow.pop %v734
      %v736 = vmul.f32 %v705, 1.442695
      %v737 = vpow.pop %v736
      %v738 = vpack.c.bf16 %v406, %v403
      %v739 = vpack.c.bf16 %v411, %v411
      %v740 = vpack.c.bf16 %v709, %v707
      %v741 = vpack.c.bf16 %v713, %v711
      %v742 = vpack.c.bf16 %v717, %v715
      %v743 = vpack.c.bf16 %v721, %v719
      %v744 = vpack.c.bf16 %v725, %v723
      %v745 = vpack.c.bf16 %v729, %v727
      %v746 = vpack.c.bf16 %v733, %v731
      %v747 = vpack.c.bf16 %v737, %v735
      %748 = vmatprep.subr.bf16.mxu0 0
      %749 = vmatpush1.bf16.xpose.msra.mxu0 %v747
      %750 = vmatprep.subr.bf16.mxu0 0
      %751 = vmatpush1.bf16.xpose.msra.mxu0 %v746
      %752 = vmatprep.subr.bf16.mxu0 0
      %753 = vmatpush1.bf16.xpose.msra.mxu0 %v745
      %754 = vmatprep.subr.bf16.mxu0 0
      %755 = vmatpush1.bf16.xpose.msra.mxu0 %v744
      %756 = vmatprep.subr.bf16.mxu0 0
      %757 = vmatpush1.bf16.xpose.msra.mxu0 %v743
      %758 = vmatprep.subr.bf16.mxu0 0
      %759 = vmatpush1.bf16.xpose.msra.mxu0 %v742
      %760 = vmatprep.subr.bf16.mxu0 0
      %761 = vmatpush1.bf16.xpose.msra.mxu0 %v741
      %762 = vmatprep.subr.bf16.mxu0 0
      %763 = vmatpush1.bf16.xpose.msra.mxu0 %v740
      %764 = vmatprep.subr.bf16.mxu0 0
      %765 = vmatpush2.bf16.xpose.msra.mxu0 0
      %766 = vmatprep.subr.bf16.mxu0 0
      %767 = vmatpush2.bf16.xpose.msra.mxu0 0
      %768 = vmatprep.subr.bf16.mxu0 0
      %769 = vmatpush2.bf16.xpose.msra.mxu0 0
      %770 = vmatprep.subr.bf16.mxu0 0
      %771 = vmatpush2.bf16.xpose.msra.mxu0 0
      %772 = vmatprep.subr.bf16.mxu0 0
      %773 = vmatpush2.bf16.xpose.msra.mxu0 0
      %774 = vmatprep.subr.bf16.mxu0 0
      %775 = vmatpush2.bf16.xpose.msra.mxu0 0
      %776 = vmatprep.subr.bf16.mxu0 0
      %777 = vmatpush2.bf16.xpose.msra.mxu0 0
      %778 = vmatprep.subr.bf16.mxu0 0
      %779 = vmatpush2.bf16.xpose.msra.mxu0 0
      %780 = vmatprep.mubr.bf16.mxu0 0
      %781 = vmatmul.mubr.bf16.gmra.mxu0 %v738
      %v782 = vpop.f32.mrf.mxu0
      %v783 = vadd.f32 0.0, %v782
      %v784 = vpop.f32.mrf.mxu0
      %v785 = vpop.f32.mrf.mxu0
      %v786 = vadd.f32 0.0, %v785
      %v787 = vpop.f32.mrf.mxu0
      %788 = vmatprep.mubr.bf16.mxu0 0
      %789 = vmatmul.mubr.bf16.gmra.mxu0 %v739
      %v790 = vpop.f32.mrf.mxu0
      %v791 = vadd.f32 0.0, %v790
      %v792 = vpop.f32.mrf.mxu0
      %v793 = vpop.f32.mrf.mxu0
      %v794 = vpop.f32.mrf.mxu0
      %795 = vdwg.mxu0
      %v796 = vrcp.pop %v791
      %v797 = vlaneseq
      %v798 = vshrl.u32 %v797, 7
      %v799 = vsub.s32 0, %v798
      %v800 = vrot.slane %v796, %v799
      %v801 = vmul.f32 %v783, %v800
      %v802 = vmul.f32 %v786, %v800
      %v803 = vadd.f32 %v801, %v323
      %v804 = vadd.f32 %v802, %v324
      %v805 = vld [vmem:[%s312] sm:$0xff]
      %v806 = vld [vmem:[%s312 + $0x8] sm:$0xff]
      %v807 = vmul.f32 %v803, %v805
      %v808 = vmul.f32 %v804, %v806
      %809 = vst [vmem:[%s321] sm:$0xff] %v807
      %810 = vst [vmem:[%s321 + $0x8] sm:$0xff] %v808
      %p811 = scmp.lt.s32.totalorder %s26, 1
      %s812 = scalar_select %p811, %s26, 1
      %p813 = scmp.lt.s32.totalorder %s27, 4
      %s814 = scalar_select %p813, %s27, 4
      %s815 = smul.addr %s814, 2
      %s816 = smul.addr %s812, 10
      %s817 = sadd.s32 %s815, %s816
      %s818 = smul.addr %s817, 8
      %s819 = scalar_lea.vmem %s5, %s818
      // Predicated region
      $region37: #{_lambda_.5} parent=35 // pred_check
        %p820 = pneg %p164
      $region38: #{_lambda_.5} parent=35 // pred_check_branch
        %822 = sbr.rel (%p820) target = $region40
      $region39: #{_lambda_.5} parent=35 // pred_region
        _
      $region40: #{_lambda_.5} parent=35 // pred_fallthru
        _
    $region36: #{_lambda_.5} parent=5 // pred_fallthru
      _
    %p823 = scmp.le.s32.totalorder 2, %s17
    // Predicated region
    $region41: #{_lambda_.5} parent=5 // pred_check
      %p824 = pneg %p823
    $region42: #{_lambda_.5} parent=5 // pred_check_branch
      %826 = sbr.rel (%p824) target = $region44
    $region43: #{_lambda_.5} parent=5 // pred_region
      %s827 = ssub.s32 %s17, 2
      // Predicated region
      $region45: #{_lambda_.5} parent=43 // pred_check
        %p828 = pneg %p170
      $region46: #{_lambda_.5} parent=43 // pred_check_branch
        %830 = sbr.rel (%p828) target = $region48
      $region47: #{_lambda_.5} parent=43 // pred_region
        %p831 = scmp.lt.s32.totalorder %s28, 1
        %s832 = scalar_select %p831, %s28, 1
        %p833 = scmp.lt.s32.totalorder %s29, 4
        %s834 = scalar_select %p833, %s29, 4
        %s835 = smul.addr %s834, 2
        %s836 = smul.addr %s832, 10
        %s837 = sadd.s32 %s835, %s836
        %s838 = smul.addr %s837, 8
        %s839 = scalar_lea.vmem %s5, %s838
      $region48: #{_lambda_.5} parent=43 // pred_fallthru
        _
    $region44: #{_lambda_.5} parent=5 // pred_fallthru
      _
  $region6: #{_lambda_.5} parent=0 // loop_footer
    %s21 = sadd.s32 1, %s17
  $region7: #{_lambda_.5} parent=0 // loop_footer_branch
    %16 = sbr.rel target = $region3
  $region8: #{_lambda_.5} parent=0 // loop_exit
    _

// kernel: _lambda_.6
$region0: #{_lambda_.6}
  #allocation0 [shape = 'u32[]', space=smem, size = 0x4, offset = 0x4, fixed_abs, tag = 'smem constant byte address 0x4 - core index']
  #allocation1 [shape = 'u32[144,128]{1,0:T(1,128)}', space=vmem, size = 0x12000, scoped, tag = 'internal scratch']
  #allocation2 [shape = 'bf16[152,256]{1,0:T(8,128)(2,1)}', space=vmem, size = 0x13000, scoped, tag = 'scratch operand']
  %s0 = inlined_call_operand.vmem [shape: f32[2,2,16,256], index: 0, kind: input, shape index: {}]
  %s1 = inlined_call_operand.vmem [shape: bf16[2,16,152], index: 1, kind: input, shape index: {}]
  %s2 = inlined_call_operand.vmem [shape: f32[9,1,256], index: 2, kind: input, shape index: {}]
  %s3 = inlined_call_operand.vmem [shape: f32[2,16,256], index: 3, kind: input, shape index: {}]
  %s4 = inlined_call_operand.vmem [shape: f32[2,2,16,256], index: 4, kind: output, shape index: {}]
  %s5 = sld [smem:[#allocation0]]
  $region49: #{_lambda_.6} parent=0
    _
  %s7 = ssub.s32 1, %s5
  %s8 = scalar_select 0, %s7, %s5
  loop: start=0, step=1, limit=6
  $region2: #{_lambda_.6} parent=0 // loop_pre_header
    _
  $region3: #{_lambda_.6} parent=0 // loop_header
    %s10 = sphi 0, %s14
    %p11 = scmp.ge.s32.totalorder %s10, 6
    %s17 = sphi 0, %s29
    %s18 = sphi 0, %s25
    %s19 = sphi 0, %s17
    %s20 = sphi 0, %s18
    %s21 = sphi 0, %s19
    %s22 = sphi 0, %s20
    %s34 = sphi 0, %s36
    %s37 = sphi 0, %s34
    %s38 = sphi 0, %s37
    %s54 = sphi 0, %s38
    %s60 = sphi 0, %s62
    %s63 = sphi 0, %s60
    %s64 = sphi 0, %s63
    %s80 = sphi 0, %s64
    %s84 = sphi 0, %s84
    %s86 = sphi 0, %s84
    %s87 = sphi 0, %s86
    %s101 = sphi 0, %s87
    %s107 = sphi 0, %s109
    %s110 = sphi 0, %s107
    %s111 = sphi 0, %s110
    %s127 = sphi 0, %s111
    %s135 = sphi 0, %s137
    %s138 = sphi 0, %s135
    %s139 = sphi 0, %s138
    %s155 = sphi 0, %s139
  $region4: #{_lambda_.6} parent=0 // loop_header_branch
    %13 = sbr.rel (%p11) target = $region8
  $region5: #{_lambda_.6} parent=0 // loop_body
    %s15 = ssub.s32 %s10, 1
    %s16 = ssub.s32 %s10, 2
    %s23 = sadd.s32 1, %s18
    %p24 = scmp.ge.s32.totalorder %s23, 2
    %s25 = scalar_select %p24, 0, %s23
    %s26 = sadd.s32 1, %s17
    %s27 = scalar_select %p24, %s26, %s17
    %p28 = scmp.ge.s32.totalorder %s27, 2
    %s29 = scalar_select %p28, 0, %s27
    %s30 = ssub.s32 %s17, %s29
    %s31 = ssub.s32 %s18, %s25
    %s32 = sor.u32 %s30, %s31
    %p33 = scmp.eq.s32.totalorder %s32, 0
    %s35 = sadd.s32 %s34, 1
    %s36 = scalar_select %p33, %s34, %s35
    %p39 = pneg %p33
    %p40 = scmp.eq.s32.totalorder %s10, 3
    %p41 = por %p39, %p40
    %p42 = scmp.ne.s32.totalorder %s34, %s37
    %p43 = scmp.eq.s32.totalorder %s10, 0
    %p44 = por %p42, %p43
    %p45 = scmp.ne.s32.totalorder %s34, %s37
    %p46 = scmp.eq.s32.totalorder %s15, 3
    %p47 = por %p45, %p46
    %p48 = scmp.ne.s32.totalorder %s37, %s38
    %p49 = scmp.eq.s32.totalorder %s15, 0
    %p50 = por %p48, %p49
    %p51 = scmp.ne.s32.totalorder %s37, %s38
    %p52 = scmp.eq.s32.totalorder %s16, 3
    %p53 = por %p51, %p52
    %p55 = scmp.ne.s32.totalorder %s38, %s54
    %p56 = scmp.eq.s32.totalorder %s16, 0
    %p57 = por %p55, %p56
    %s58 = ssub.s32 %s18, %s25
    %p59 = scmp.eq.s32.totalorder %s58, 0
    %s61 = sadd.s32 %s60, 1
    %s62 = scalar_select %p59, %s60, %s61
    %p65 = pneg %p59
    %p66 = scmp.eq.s32.totalorder %s10, 3
    %p67 = por %p65, %p66
    %p68 = scmp.ne.s32.totalorder %s60, %s63
    %p69 = scmp.eq.s32.totalorder %s10, 0
    %p70 = por %p68, %p69
    %p71 = scmp.ne.s32.totalorder %s60, %s63
    %p72 = scmp.eq.s32.totalorder %s15, 3
    %p73 = por %p71, %p72
    %p74 = scmp.ne.s32.totalorder %s63, %s64
    %p75 = scmp.eq.s32.totalorder %s15, 0
    %p76 = por %p74, %p75
    %p77 = scmp.ne.s32.totalorder %s63, %s64
    %p78 = scmp.eq.s32.totalorder %s16, 3
    %p79 = por %p77, %p78
    %p81 = scmp.ne.s32.totalorder %s64, %s80
    %p82 = scmp.eq.s32.totalorder %s16, 0
    %p83 = por %p81, %p82
    %s85 = sadd.s32 %s84, 1
    %p88 = scmp.eq.s32.totalorder %s10, 3
    %p89 = scmp.ne.s32.totalorder %s84, %s86
    %p90 = scmp.eq.s32.totalorder %s10, 0
    %p91 = por %p89, %p90
    %p92 = scmp.ne.s32.totalorder %s84, %s86
    %p93 = scmp.eq.s32.totalorder %s15, 3
    %p94 = por %p92, %p93
    %p95 = scmp.ne.s32.totalorder %s86, %s87
    %p96 = scmp.eq.s32.totalorder %s15, 0
    %p97 = por %p95, %p96
    %p98 = scmp.ne.s32.totalorder %s86, %s87
    %p99 = scmp.eq.s32.totalorder %s16, 3
    %p100 = por %p98, %p99
    %p102 = scmp.ne.s32.totalorder %s87, %s101
    %p103 = scmp.eq.s32.totalorder %s16, 0
    %p104 = por %p102, %p103
    %s105 = ssub.s32 %s17, %s29
    %p106 = scmp.eq.s32.totalorder %s105, 0
    %s108 = sadd.s32 %s107, 1
    %s109 = scalar_select %p106, %s107, %s108
    %p112 = pneg %p106
    %p113 = scmp.eq.s32.totalorder %s10, 3
    %p114 = por %p112, %p113
    %p115 = scmp.ne.s32.totalorder %s107, %s110
    %p116 = scmp.eq.s32.totalorder %s10, 0
    %p117 = por %p115, %p116
    %p118 = scmp.ne.s32.totalorder %s107, %s110
    %p119 = scmp.eq.s32.totalorder %s15, 3
    %p120 = por %p118, %p119
    %p121 = scmp.ne.s32.totalorder %s110, %s111
    %p122 = scmp.eq.s32.totalorder %s15, 0
    %p123 = por %p121, %p122
    %p124 = scmp.ne.s32.totalorder %s110, %s111
    %p125 = scmp.eq.s32.totalorder %s16, 3
    %p126 = por %p124, %p125
    %p128 = scmp.ne.s32.totalorder %s111, %s127
    %p129 = scmp.eq.s32.totalorder %s16, 0
    %p130 = por %p128, %p129
    %s131 = ssub.s32 %s17, %s29
    %s132 = ssub.s32 %s18, %s25
    %s133 = sor.u32 %s131, %s132
    %p134 = scmp.eq.s32.totalorder %s133, 0
    %s136 = sadd.s32 %s135, 1
    %s137 = scalar_select %p134, %s135, %s136
    %p140 = pneg %p134
    %p141 = scmp.eq.s32.totalorder %s10, 3
    %p142 = por %p140, %p141
    %p143 = scmp.ne.s32.totalorder %s135, %s138
    %p144 = scmp.eq.s32.totalorder %s10, 0
    %p145 = por %p143, %p144
    %p146 = scmp.ne.s32.totalorder %s135, %s138
    %p147 = scmp.eq.s32.totalorder %s15, 3
    %p148 = por %p146, %p147
    %p149 = scmp.ne.s32.totalorder %s138, %s139
    %p150 = scmp.eq.s32.totalorder %s15, 0
    %p151 = por %p149, %p150
    %p152 = scmp.ne.s32.totalorder %s138, %s139
    %p153 = scmp.eq.s32.totalorder %s16, 3
    %p154 = por %p152, %p153
    %p156 = scmp.ne.s32.totalorder %s139, %s155
    %p157 = scmp.eq.s32.totalorder %s16, 0
    %p158 = por %p156, %p157
    %p159 = scmp.le.s32.totalorder 1, %s10
    %p160 = scmp.lt.s32.totalorder %s10, 5
    %p161 = pnand %p159, %p160
    %p162 = pneg %p161
    // Predicated region
    $region9: #{_lambda_.6} parent=5 // pred_check
      _
    $region10: #{_lambda_.6} parent=5 // pred_check_branch
      %164 = sbr.rel (%p161) target = $region12
    $region11: #{_lambda_.6} parent=5 // pred_region
      %s165 = ssub.s32 %s10, 1
      // Predicated region
      $region13: #{_lambda_.6} parent=11 // pred_check
        %p166 = pneg %p97
      $region14: #{_lambda_.6} parent=11 // pred_check_branch
        %168 = sbr.rel (%p166) target = $region16
      $region15: #{_lambda_.6} parent=11 // pred_region
        _
      $region16: #{_lambda_.6} parent=11 // pred_fallthru
        _
    $region12: #{_lambda_.6} parent=5 // pred_fallthru
      _
    %p169 = scmp.lt.s32.totalorder %s10, 4
    // Predicated region
    $region17: #{_lambda_.6} parent=5 // pred_check
      %p170 = pneg %p169
    $region18: #{_lambda_.6} parent=5 // pred_check_branch
      %172 = sbr.rel (%p170) target = $region20
    $region19: #{_lambda_.6} parent=5 // pred_region
      // Predicated region
      $region21: #{_lambda_.6} parent=19 // pred_check
        %p173 = pneg %p44
      $region22: #{_lambda_.6} parent=19 // pred_check_branch
        %175 = sbr.rel (%p173) target = $region24
      $region23: #{_lambda_.6} parent=19 // pred_region
        %p176 = scmp.lt.s32.totalorder %s17, 1
        %s177 = scalar_select %p176, %s17, 1
        %p178 = scmp.lt.s32.totalorder %s18, 1
        %s179 = scalar_select %p178, %s18, 1
        %s180 = smul.addr %s179, 4
        %s181 = smul.addr %s177, 8
        %s182 = sadd.s32 %s180, %s181
        %s183 = smul.addr %s182, 8
        %s184 = scalar_lea.vmem %s0, %s183
      $region24: #{_lambda_.6} parent=19 // pred_fallthru
        _
      // Predicated region
      $region25: #{_lambda_.6} parent=19 // pred_check
        %p185 = pneg %p70
      $region26: #{_lambda_.6} parent=19 // pred_check_branch
        %187 = sbr.rel (%p185) target = $region28
      $region27: #{_lambda_.6} parent=19 // pred_region
        %p188 = scmp.lt.s32.totalorder %s18, 1
        %s189 = scalar_select %p188, %s18, 1
        %s190 = smul.addr %s189, 4
        %s191 = smul.addr %s190, 4
        %s192 = scalar_lea.vmem %s1, %s191
      $region28: #{_lambda_.6} parent=19 // pred_fallthru
        _
      // Predicated region
      $region29: #{_lambda_.6} parent=19 // pred_check
        %p193 = pneg %p117
      $region30: #{_lambda_.6} parent=19 // pred_check_branch
        %195 = sbr.rel (%p193) target = $region32
      $region31: #{_lambda_.6} parent=19 // pred_region
        %p196 = scmp.lt.s32.totalorder %s17, 1
        %s197 = scalar_select %p196, %s17, 1
        %s198 = smul.addr %s197, 4
        %s199 = smul.addr %s198, 8
        %s200 = scalar_lea.vmem %s3, %s199
      $region32: #{_lambda_.6} parent=19 // pred_fallthru
        _
    $region20: #{_lambda_.6} parent=5 // pred_fallthru
      _
    %p201 = scmp.le.s32.totalorder 1, %s10
    %p202 = scmp.lt.s32.totalorder %s10, 5
    %p203 = pnand %p201, %p202
    %p204 = pneg %p203
    // Predicated region
    $region33: #{_lambda_.6} parent=5 // pred_check
      _
    $region34: #{_lambda_.6} parent=5 // pred_check_branch
      %206 = sbr.rel (%p203) target = $region36
    $region35: #{_lambda_.6} parent=5 // pred_region
      %s207 = ssub.s32 %s10, 1
      %p208 = scmp.lt.s32.totalorder %s19, 1
      %s209 = scalar_select %p208, %s19, 1
      %p210 = scmp.lt.s32.totalorder %s20, 1
      %s211 = scalar_select %p210, %s20, 1
      %s212 = smul.addr %s211, 4
      %s213 = smul.addr %s209, 8
      %s214 = sadd.s32 %s212, %s213
      %s215 = smul.addr %s214, 8
      %s216 = scalar_lea.vmem %s0, %s215
      %p217 = pneg %p50
      %p218 = pneg %p47
      %p219 = scmp.lt.s32.totalorder %s20, 1
      %s220 = scalar_select %p219, %s20, 1
      %s221 = smul.addr %s220, 4
      %s222 = smul.addr %s221, 4
      %s223 = scalar_lea.vmem %s1, %s222
      %p224 = pneg %p76
      %p225 = pneg %p73
      %p226 = pneg %p97
      %p227 = pneg %p94
      %p228 = scmp.lt.s32.totalorder %s19, 1
      %s229 = scalar_select %p228, %s19, 1
      %s230 = smul.addr %s229, 4
      %s231 = smul.addr %s230, 8
      %s232 = scalar_lea.vmem %s3, %s231
      %p233 = pneg %p123
      %p234 = pneg %p120
      %p235 = pneg %p151
      %p236 = pneg %p148
      %p237 = scmp.lt.s32.totalorder %s19, 1
      %s238 = scalar_select %p237, %s19, 1
      %p239 = scmp.lt.s32.totalorder %s20, 1
      %s240 = scalar_select %p239, %s20, 1
      %s241 = smul.addr %s240, 4
      %s242 = smul.addr %s238, 8
      %s243 = sadd.s32 %s241, %s242
      %s244 = smul.addr %s243, 8
      %s245 = scalar_lea.vmem %s4, %s244
      %p246 = scmp.lt.s32.totalorder %s19, 1
      %s247 = scalar_select %p246, %s19, 1
      %p248 = scmp.lt.s32.totalorder %s20, 1
      %s249 = scalar_select %p248, %s20, 1
      %s250 = smul.addr %s249, 4
      %s251 = smul.addr %s247, 8
      %s252 = sadd.s32 %s250, %s251
      %s253 = smul.addr %s252, 8
      %s254 = scalar_lea.vmem %s0, %s253
      %p255 = scmp.lt.s32.totalorder %s20, 1
      %s256 = scalar_select %p255, %s20, 1
      %s257 = smul.addr %s256, 4
      %s258 = smul.addr %s257, 4
      %s259 = scalar_lea.vmem %s1, %s258
      %p260 = scmp.lt.s32.totalorder %s19, 1
      %s261 = scalar_select %p260, %s19, 1
      %s262 = smul.addr %s261, 4
      %s263 = smul.addr %s262, 8
      %s264 = scalar_lea.vmem %s3, %s263
      %p265 = scmp.lt.s32.totalorder %s19, 1
      %s266 = scalar_select %p265, %s19, 1
      %p267 = scmp.lt.s32.totalorder %s20, 1
      %s268 = scalar_select %p267, %s20, 1
      %s269 = smul.addr %s268, 4
      %s270 = smul.addr %s266, 8
      %s271 = sadd.s32 %s269, %s270
      %s272 = smul.addr %s271, 8
      %s273 = scalar_lea.vmem %s4, %s272
      %v275 = vld [vmem:[%s254] sm:$0xff]
      %v276 = vld [vmem:[%s254 + $0x8] sm:$0xff]
      %v277 = vld [vmem:[%s254 + $0x10] sm:$0xff]
      %v278 = vld [vmem:[%s254 + $0x18] sm:$0xff]
      %279 = vrot.lane.b32.xlu0 %v275, 17
      %v280 = vpop.permute.xlu0 %279
      %281 = vrot.lane.b32.xlu0 %v277, 17
      %v282 = vpop.permute.xlu0 %281
      %283 = vrot.lane.b32.xlu0 %v276, 17
      %v284 = vpop.permute.xlu0 %283
      %285 = vrot.lane.b32.xlu0 %v278, 17
      %v286 = vpop.permute.xlu0 %285
      %v287 = vlaneseq
      %v288 = vand.u32 %v287, 127
      %vm289 = vcmp.lt.s32.totalorder %v288, 17
      %v290 = vsel %vm289, %v280, %v284
      %v291 = vsel %vm289, %v282, %v286
      %v292 = vsel %vm289, %v284, %v280
      %v293 = vsel %vm289, %v286, %v282
      %v294 = vld [vmem:[%s2] sm:$0x3]
      %v296 = vlaneseq
      %v297 = vshrl.u32 %v296, 7
      %v298 = vsub.s32 0, %v297
      %v299 = vrot.slane %v294, %v298
      %v300 = vlaneseq
      %v301 = vshrl.u32 %v300, 7
      %v302 = vsub.s32 1, %v301
      %v303 = vrot.slane %v294, %v302
      %v306 = vmul.f32 %v292, %v299
      %v307 = vmul.f32 %v290, %v303
      %v308 = vmul.f32 %v293, %v299
      %v309 = vmul.f32 %v291, %v303
      %v310 = vpack.c.bf16 %v308, %v306
      %v311 = vpack.c.bf16 %v309, %v307
      %v314 = vunpack.c.l.b16 %v310
      %v315 = vunpack.c.l.b16 %v311
      %v316 = vunpack.c.h.b16 %v310
      %v317 = vunpack.c.h.b16 %v311
      %v318 = vpack.c.b16 %v315, %v314
      %v319 = vpack.c.b16 %v317, %v316
      %322 = vst [vmem:[#allocation2] sm:$0xff] %v318
      %323 = vst [vmem:[#allocation2 + $0x8] sm:$0xff] %v319
      %324 = vrot.lane.b32.xlu0 %v275, 16
      %v325 = vpop.permute.xlu0 %324
      %326 = vrot.lane.b32.xlu0 %v277, 16
      %v327 = vpop.permute.xlu0 %326
      %328 = vrot.lane.b32.xlu0 %v276, 16
      %v329 = vpop.permute.xlu0 %328
      %330 = vrot.lane.b32.xlu0 %v278, 16
      %v331 = vpop.permute.xlu0 %330
      %vm332 = vcmp.lt.s32.totalorder %v288, 16
      %v333 = vsel %vm332, %v325, %v329
      %v334 = vsel %vm332, %v327, %v331
      %v335 = vsel %vm332, %v329, %v325
      %v336 = vsel %vm332, %v331, %v327
      %s337 = scalar_lea.vmem %s2, 2
      %v338 = vld [vmem:[%s337] sm:$0x3]
      %v340 = vlaneseq
      %v341 = vshrl.u32 %v340, 7
      %v342 = vsub.s32 0, %v341
      %v343 = vrot.slane %v338, %v342
      %v344 = vlaneseq
      %v345 = vshrl.u32 %v344, 7
      %v346 = vsub.s32 1, %v345
      %v347 = vrot.slane %v338, %v346
      %v350 = vmul.f32 %v335, %v343
      %v351 = vmul.f32 %v333, %v347
      %v352 = vmul.f32 %v336, %v343
      %v353 = vmul.f32 %v334, %v347
      %v354 = vpack.c.bf16 %v352, %v350
      %v355 = vpack.c.bf16 %v353, %v351
      %v358 = vunpack.c.l.b16 %v354
      %v359 = vunpack.c.l.b16 %v355
      %v360 = vunpack.c.h.b16 %v354
      %v361 = vunpack.c.h.b16 %v355
      %v362 = vpack.c.b16 %v359, %v358
      %v363 = vpack.c.b16 %v361, %v360
      %366 = vst [vmem:[#allocation2 + $0x10] sm:$0xff] %v362
      %367 = vst [vmem:[#allocation2 + $0x18] sm:$0xff] %v363
      %368 = vrot.lane.b32.xlu0 %v275, 15
      %v369 = vpop.permute.xlu0 %368
      %370 = vrot.lane.b32.xlu0 %v277, 15
      %v371 = vpop.permute.xlu0 %370
      %372 = vrot.lane.b32.xlu0 %v276, 15
      %v373 = vpop.permute.xlu0 %372
      %374 = vrot.lane.b32.xlu0 %v278, 15
      %v375 = vpop.permute.xlu0 %374
      %vm376 = vcmp.lt.s32.totalorder %v288, 15
      %v377 = vsel %vm376, %v369, %v373
      %v378 = vsel %vm376, %v371, %v375
      %v379 = vsel %vm376, %v373, %v369
      %v380 = vsel %vm376, %v375, %v371
      %s381 = scalar_lea.vmem %s2, 4
      %v382 = vld [vmem:[%s381] sm:$0x3]
      %v384 = vlaneseq
      %v385 = vshrl.u32 %v384, 7
      %v386 = vsub.s32 0, %v385
      %v387 = vrot.slane %v382, %v386
      %v388 = vlaneseq
      %v389 = vshrl.u32 %v388, 7
      %v390 = vsub.s32 1, %v389
      %v391 = vrot.slane %v382, %v390
      %v394 = vmul.f32 %v379, %v387
      %v395 = vmul.f32 %v377, %v391
      %v396 = vmul.f32 %v380, %v387
      %v397 = vmul.f32 %v378, %v391
      %v398 = vpack.c.bf16 %v396, %v394
      %v399 = vpack.c.bf16 %v397, %v395
      %v402 = vunpack.c.l.b16 %v398
      %v403 = vunpack.c.l.b16 %v399
      %v404 = vunpack.c.h.b16 %v398
      %v405 = vunpack.c.h.b16 %v399
      %v406 = vpack.c.b16 %v403, %v402
      %v407 = vpack.c.b16 %v405, %v404
      %410 = vst [vmem:[#allocation2 + $0x20] sm:$0xff] %v406
      %411 = vst [vmem:[#allocation2 + $0x28] sm:$0xff] %v407
      %412 = vrot.lane.b32.xlu0 %v275, 1
      %v413 = vpop.permute.xlu0 %412
      %414 = vrot.lane.b32.xlu0 %v277, 1
      %v415 = vpop.permute.xlu0 %414
      %416 = vrot.lane.b32.xlu0 %v276, 1
      %v417 = vpop.permute.xlu0 %416
      %418 = vrot.lane.b32.xlu0 %v278, 1
      %v419 = vpop.permute.xlu0 %418
      %vm420 = vcmp.lt.s32.totalorder %v288, 1
      %v421 = vsel %vm420, %v413, %v417
      %v422 = vsel %vm420, %v415, %v419
      %v423 = vsel %vm420, %v417, %v413
      %v424 = vsel %vm420, %v419, %v415
      %s425 = scalar_lea.vmem %s2, 6
      %v426 = vld [vmem:[%s425] sm:$0x3]
      %v428 = vlaneseq
      %v429 = vshrl.u32 %v428, 7
      %v430 = vsub.s32 0, %v429
      %v431 = vrot.slane %v426, %v430
      %v432 = vlaneseq
      %v433 = vshrl.u32 %v432, 7
      %v434 = vsub.s32 1, %v433
      %v435 = vrot.slane %v426, %v434
      %v438 = vmul.f32 %v423, %v431
      %v439 = vmul.f32 %v421, %v435
      %v440 = vmul.f32 %v424, %v431
      %v441 = vmul.f32 %v422, %v435
      %v442 = vpack.c.bf16 %v440, %v438
      %v443 = vpack.c.bf16 %v441, %v439
      %v446 = vunpack.c.l.b16 %v442
      %v447 = vunpack.c.l.b16 %v443
      %v448 = vunpack.c.h.b16 %v442
      %v449 = vunpack.c.h.b16 %v443
      %v450 = vpack.c.b16 %v447, %v446
      %v451 = vpack.c.b16 %v449, %v448
      %454 = vst [vmem:[#allocation2 + $0x30] sm:$0xff] %v450
      %455 = vst [vmem:[#allocation2 + $0x38] sm:$0xff] %v451
      %s456 = scalar_lea.vmem %s2, 8
      %v457 = vld [vmem:[%s456] sm:$0x3]
      %v459 = vlaneseq
      %v460 = vshrl.u32 %v459, 7
      %v461 = vsub.s32 0, %v460
      %v462 = vrot.slane %v457, %v461
      %v463 = vlaneseq
      %v464 = vshrl.u32 %v463, 7
      %v465 = vsub.s32 1, %v464
      %v466 = vrot.slane %v457, %v465
      %v469 = vmul.f32 %v275, %v462
      %v470 = vmul.f32 %v276, %v466
      %v471 = vmul.f32 %v277, %v462
      %v472 = vmul.f32 %v278, %v466
      %v473 = vpack.c.bf16 %v471, %v469
      %v474 = vpack.c.bf16 %v472, %v470
      %v477 = vunpack.c.l.b16 %v473
      %v478 = vunpack.c.l.b16 %v474
      %v479 = vunpack.c.h.b16 %v473
      %v480 = vunpack.c.h.b16 %v474
      %v481 = vpack.c.b16 %v478, %v477
      %v482 = vpack.c.b16 %v480, %v479
      %485 = vst [vmem:[#allocation2 + $0x40] sm:$0xff] %v481
      %486 = vst [vmem:[#allocation2 + $0x48] sm:$0xff] %v482
      %487 = vrot.lane.b32.xlu0 %v275, 127
      %v488 = vpop.permute.xlu0 %487
      %489 = vrot.lane.b32.xlu0 %v277, 127
      %v490 = vpop.permute.xlu0 %489
      %491 = vrot.lane.b32.xlu0 %v276, 127
      %v492 = vpop.permute.xlu0 %491
      %493 = vrot.lane.b32.xlu0 %v278, 127
      %v494 = vpop.permute.xlu0 %493
      %vm495 = vcmp.lt.s32.totalorder %v288, 127
      %v496 = vsel %vm495, %v488, %v492
      %v497 = vsel %vm495, %v490, %v494
      %v498 = vsel %vm495, %v492, %v488
      %v499 = vsel %vm495, %v494, %v490
      %s500 = scalar_lea.vmem %s2, 10
      %v501 = vld [vmem:[%s500] sm:$0x3]
      %v503 = vlaneseq
      %v504 = vshrl.u32 %v503, 7
      %v505 = vsub.s32 0, %v504
      %v506 = vrot.slane %v501, %v505
      %v507 = vlaneseq
      %v508 = vshrl.u32 %v507, 7
      %v509 = vsub.s32 1, %v508
      %v510 = vrot.slane %v501, %v509
      %v513 = vmul.f32 %v496, %v506
      %v514 = vmul.f32 %v498, %v510
      %v515 = vmul.f32 %v497, %v506
      %v516 = vmul.f32 %v499, %v510
      %v517 = vpack.c.bf16 %v515, %v513
      %v518 = vpack.c.bf16 %v516, %v514
      %v521 = vunpack.c.l.b16 %v517
      %v522 = vunpack.c.l.b16 %v518
      %v523 = vunpack.c.h.b16 %v517
      %v524 = vunpack.c.h.b16 %v518
      %v525 = vpack.c.b16 %v522, %v521
      %v526 = vpack.c.b16 %v524, %v523
      %529 = vst [vmem:[#allocation2 + $0x50] sm:$0xff] %v525
      %530 = vst [vmem:[#allocation2 + $0x58] sm:$0xff] %v526
      %531 = vrot.lane.b32.xlu0 %v275, 113
      %v532 = vpop.permute.xlu0 %531
      %533 = vrot.lane.b32.xlu0 %v277, 113
      %v534 = vpop.permute.xlu0 %533
      %535 = vrot.lane.b32.xlu0 %v276, 113
      %v536 = vpop.permute.xlu0 %535
      %537 = vrot.lane.b32.xlu0 %v278, 113
      %v538 = vpop.permute.xlu0 %537
      %vm539 = vcmp.lt.s32.totalorder %v288, 113
      %v540 = vsel %vm539, %v532, %v536
      %v541 = vsel %vm539, %v534, %v538
      %v542 = vsel %vm539, %v536, %v532
      %v543 = vsel %vm539, %v538, %v534
      %s544 = scalar_lea.vmem %s2, 12
      %v545 = vld [vmem:[%s544] sm:$0x3]
      %v547 = vlaneseq
      %v548 = vshrl.u32 %v547, 7
      %v549 = vsub.s32 0, %v548
      %v550 = vrot.slane %v545, %v549
      %v551 = vlaneseq
      %v552 = vshrl.u32 %v551, 7
      %v553 = vsub.s32 1, %v552
      %v554 = vrot.slane %v545, %v553
      %v557 = vmul.f32 %v540, %v550
      %v558 = vmul.f32 %v542, %v554
      %v559 = vmul.f32 %v541, %v550
      %v560 = vmul.f32 %v543, %v554
      %v561 = vpack.c.bf16 %v559, %v557
      %v562 = vpack.c.bf16 %v560, %v558
      %v565 = vunpack.c.l.b16 %v561
      %v566 = vunpack.c.l.b16 %v562
      %v567 = vunpack.c.h.b16 %v561
      %v568 = vunpack.c.h.b16 %v562
      %v569 = vpack.c.b16 %v566, %v565
      %v570 = vpack.c.b16 %v568, %v567
      %573 = vst [vmem:[#allocation2 + $0x60] sm:$0xff] %v569
      %574 = vst [vmem:[#allocation2 + $0x68] sm:$0xff] %v570
      %575 = vrot.lane.b32.xlu0 %v275, 112
      %v576 = vpop.permute.xlu0 %575
      %577 = vrot.lane.b32.xlu0 %v277, 112
      %v578 = vpop.permute.xlu0 %577
      %579 = vrot.lane.b32.xlu0 %v276, 112
      %v580 = vpop.permute.xlu0 %579
      %581 = vrot.lane.b32.xlu0 %v278, 112
      %v582 = vpop.permute.xlu0 %581
      %vm583 = vcmp.lt.s32.totalorder %v288, 112
      %v584 = vsel %vm583, %v576, %v580
      %v585 = vsel %vm583, %v578, %v582
      %v586 = vsel %vm583, %v580, %v576
      %v587 = vsel %vm583, %v582, %v578
      %s588 = scalar_lea.vmem %s2, 14
      %v589 = vld [vmem:[%s588] sm:$0x3]
      %v591 = vlaneseq
      %v592 = vshrl.u32 %v591, 7
      %v593 = vsub.s32 0, %v592
      %v594 = vrot.slane %v589, %v593
      %v595 = vlaneseq
      %v596 = vshrl.u32 %v595, 7
      %v597 = vsub.s32 1, %v596
      %v598 = vrot.slane %v589, %v597
      %v601 = vmul.f32 %v584, %v594
      %v602 = vmul.f32 %v586, %v598
      %v603 = vmul.f32 %v585, %v594
      %v604 = vmul.f32 %v587, %v598
      %v605 = vpack.c.bf16 %v603, %v601
      %v606 = vpack.c.bf16 %v604, %v602
      %v609 = vunpack.c.l.b16 %v605
      %v610 = vunpack.c.l.b16 %v606
      %v611 = vunpack.c.h.b16 %v605
      %v612 = vunpack.c.h.b16 %v606
      %v613 = vpack.c.b16 %v610, %v609
      %v614 = vpack.c.b16 %v612, %v611
      %617 = vst [vmem:[#allocation2 + $0x70] sm:$0xff] %v613
      %618 = vst [vmem:[#allocation2 + $0x78] sm:$0xff] %v614
      %619 = vrot.lane.b32.xlu0 %v275, 111
      %v620 = vpop.permute.xlu0 %619
      %621 = vrot.lane.b32.xlu0 %v277, 111
      %v622 = vpop.permute.xlu0 %621
      %623 = vrot.lane.b32.xlu0 %v276, 111
      %v624 = vpop.permute.xlu0 %623
      %625 = vrot.lane.b32.xlu0 %v278, 111
      %v626 = vpop.permute.xlu0 %625
      %vm627 = vcmp.lt.s32.totalorder %v288, 111
      %v628 = vsel %vm627, %v620, %v624
      %v629 = vsel %vm627, %v622, %v626
      %v630 = vsel %vm627, %v624, %v620
      %v631 = vsel %vm627, %v626, %v622
      %s632 = scalar_lea.vmem %s2, 16
      %v633 = vld [vmem:[%s632] sm:$0x3]
      %v635 = vlaneseq
      %v636 = vshrl.u32 %v635, 7
      %v637 = vsub.s32 0, %v636
      %v638 = vrot.slane %v633, %v637
      %v639 = vlaneseq
      %v640 = vshrl.u32 %v639, 7
      %v641 = vsub.s32 1, %v640
      %v642 = vrot.slane %v633, %v641
      %v645 = vmul.f32 %v628, %v638
      %v646 = vmul.f32 %v630, %v642
      %v647 = vmul.f32 %v629, %v638
      %v648 = vmul.f32 %v631, %v642
      %v649 = vpack.c.bf16 %v647, %v645
      %v650 = vpack.c.bf16 %v648, %v646
      %v653 = vunpack.c.l.b16 %v649
      %v654 = vunpack.c.l.b16 %v650
      %v655 = vunpack.c.h.b16 %v649
      %v656 = vunpack.c.h.b16 %v650
      %v657 = vpack.c.b16 %v654, %v653
      %v658 = vpack.c.b16 %v656, %v655
      %661 = vst [vmem:[#allocation2 + $0x80] sm:$0xff] %v657
      %662 = vst [vmem:[#allocation2 + $0x88] sm:$0xff] %v658
      %v663 = vlaneseq
      %v664 = vshrl.u32 %v663, 7
      %vm665 = vcmp.eq.s32.totalorder %v664, 0
      %v666 = vsel %vm665, 1, 0
      %v667 = vcvt.s32.f32 %v666
      %v668 = vpack.c.bf16 %v667, %v667
      %v671 = vunpack.c.l.s4 839922192
      %v672 = vunpack.c.0.s8 %v671
      %v673 = vlaneseq
      %v674 = vshrl.u32 %v673, 7
      %v675 = vsub.s32 %v672, %v674
      %v676 = vrot.slane %v668, %v675
      %678 = vst [vmem:[#allocation2 + $0x90] sm:$0xff] %v676
      %v679 = vld [vmem:[%s259] sm:$0xff]
      %v680 = vld [vmem:[%s259 + $0x8] sm:$0xff]
      %v681 = vld [vmem:[#allocation2] sm:$0xff]
      %v682 = vld [vmem:[#allocation2 + $0x8] sm:$0xff]
      %v683 = vld [vmem:[#allocation2 + $0x10] sm:$0xff]
      %v684 = vld [vmem:[#allocation2 + $0x18] sm:$0xff]
      %v685 = vld [vmem:[#allocation2 + $0x20] sm:$0xff]
      %v686 = vld [vmem:[#allocation2 + $0x28] sm:$0xff]
      %v687 = vld [vmem:[#allocation2 + $0x30] sm:$0xff]
      %v688 = vld [vmem:[#allocation2 + $0x38] sm:$0xff]
      %v689 = vld [vmem:[#allocation2 + $0x40] sm:$0xff]
      %v690 = vld [vmem:[#allocation2 + $0x48] sm:$0xff]
      %v691 = vld [vmem:[#allocation2 + $0x50] sm:$0xff]
      %v692 = vld [vmem:[#allocation2 + $0x58] sm:$0xff]
      %v693 = vld [vmem:[#allocation2 + $0x60] sm:$0xff]
      %v694 = vld [vmem:[#allocation2 + $0x68] sm:$0xff]
      %v695 = vld [vmem:[#allocation2 + $0x70] sm:$0xff]
      %v696 = vld [vmem:[#allocation2 + $0x78] sm:$0xff]
      %v697 = vld [vmem:[#allocation2 + $0x80] sm:$0xff]
      %v698 = vld [vmem:[#allocation2 + $0x88] sm:$0xff]
      %v699 = vld [vmem:[#allocation2 + $0x90] sm:$0xff]
      %v700 = vld [vmem:[%s264] sm:$0xff]
      %v701 = vld [vmem:[%s264 + $0x8] sm:$0xff]
      %v702 = vld [vmem:[%s264 + $0x10] sm:$0xff]
      %v703 = vld [vmem:[%s264 + $0x18] sm:$0xff]
      %v706 = vunpack.c.l.b16 %v679
      %v707 = vunpack.c.h.b16 %v679
      %v708 = vunpack.c.l.b16 %v680
      %v709 = vunpack.c.h.b16 %v680
      %v710 = vpack.c.b16 %v708, %v706
      %v711 = vpack.c.b16 %v709, %v707
      %v732 = vunpack.c.l.b16 %v681
      %v733 = vunpack.c.h.b16 %v681
      %v734 = vunpack.c.l.b16 %v682
      %v735 = vunpack.c.h.b16 %v682
      %v736 = vunpack.c.l.b16 %v683
      %v737 = vunpack.c.h.b16 %v683
      %v738 = vunpack.c.l.b16 %v684
      %v739 = vunpack.c.h.b16 %v684
      %v740 = vunpack.c.l.b16 %v685
      %v741 = vunpack.c.h.b16 %v685
      %v742 = vunpack.c.l.b16 %v686
      %v743 = vunpack.c.h.b16 %v686
      %v744 = vunpack.c.l.b16 %v687
      %v745 = vunpack.c.h.b16 %v687
      %v746 = vunpack.c.l.b16 %v688
      %v747 = vunpack.c.h.b16 %v688
      %v748 = vunpack.c.l.b16 %v689
      %v749 = vunpack.c.h.b16 %v689
      %v750 = vunpack.c.l.b16 %v690
      %v751 = vunpack.c.h.b16 %v690
      %v752 = vunpack.c.l.b16 %v691
      %v753 = vunpack.c.h.b16 %v691
      %v754 = vunpack.c.l.b16 %v692
      %v755 = vunpack.c.h.b16 %v692
      %v756 = vunpack.c.l.b16 %v693
      %v757 = vunpack.c.h.b16 %v693
      %v758 = vunpack.c.l.b16 %v694
      %v759 = vunpack.c.h.b16 %v694
      %v760 = vunpack.c.l.b16 %v695
      %v761 = vunpack.c.h.b16 %v695
      %v762 = vunpack.c.l.b16 %v696
      %v763 = vunpack.c.h.b16 %v696
      %v764 = vunpack.c.l.b16 %v697
      %v765 = vunpack.c.h.b16 %v697
      %v766 = vunpack.c.l.b16 %v698
      %v767 = vunpack.c.h.b16 %v698
      %v768 = vunpack.c.l.b16 %v699
      %v769 = vunpack.c.h.b16 %v699
      %v770 = vpack.c.b16 %v734, %v732
      %v771 = vpack.c.b16 %v735, %v733
      %v772 = vpack.c.b16 %v738, %v736
      %v773 = vpack.c.b16 %v739, %v737
      %v774 = vpack.c.b16 %v742, %v740
      %v775 = vpack.c.b16 %v743, %v741
      %v776 = vpack.c.b16 %v746, %v744
      %v777 = vpack.c.b16 %v747, %v745
      %v778 = vpack.c.b16 %v750, %v748
      %v779 = vpack.c.b16 %v751, %v749
      %v780 = vpack.c.b16 %v754, %v752
      %v781 = vpack.c.b16 %v755, %v753
      %v782 = vpack.c.b16 %v758, %v756
      %v783 = vpack.c.b16 %v759, %v757
      %v784 = vpack.c.b16 %v762, %v760
      %v785 = vpack.c.b16 %v763, %v761
      %v786 = vpack.c.b16 %v766, %v764
      %v787 = vpack.c.b16 %v767, %v765
      %v788 = vpack.c.b16 %v768, %v768
      %v789 = vpack.c.b16 %v769, %v769
      %vm808 = vcmask 195584
      %v810 = vsel %vm808, %v711, 0
      %vm812 = vcmask 1043456
      %v814 = vsel %vm812, %v788, 0
      %v817 = vsel %vm812, %v789, 0
      %819 = vmatprep.subr.bf16.mxu0 %v785
      %820 = vmatpush1.bf16.msra.mxu0 %v784
      %821 = vmatprep.subr.bf16.mxu0 %v783
      %822 = vmatpush1.bf16.msra.mxu0 %v782
      %823 = vmatprep.subr.bf16.mxu0 %v781
      %824 = vmatpush1.bf16.msra.mxu0 %v780
      %825 = vmatprep.subr.bf16.mxu0 %v779
      %826 = vmatpush1.bf16.msra.mxu0 %v778
      %827 = vmatprep.subr.bf16.mxu0 %v777
      %828 = vmatpush1.bf16.msra.mxu0 %v776
      %829 = vmatprep.subr.bf16.mxu0 %v775
      %830 = vmatpush1.bf16.msra.mxu0 %v774
      %831 = vmatprep.subr.bf16.mxu0 %v773
      %832 = vmatpush1.bf16.msra.mxu0 %v772
      %833 = vmatprep.subr.bf16.mxu0 %v771
      %834 = vmatpush1.bf16.msra.mxu0 %v770
      %835 = vmatprep.subr.bf16.mxu0 0
      %836 = vmatpush2.bf16.msra.mxu0 0
      %837 = vmatprep.subr.bf16.mxu0 0
      %838 = vmatpush2.bf16.msra.mxu0 0
      %839 = vmatprep.subr.bf16.mxu0 0
      %840 = vmatpush2.bf16.msra.mxu0 0
      %841 = vmatprep.subr.bf16.mxu0 0
      %842 = vmatpush2.bf16.msra.mxu0 0
      %843 = vmatprep.subr.bf16.mxu0 0
      %844 = vmatpush2.bf16.msra.mxu0 0
      %845 = vmatprep.subr.bf16.mxu0 0
      %846 = vmatpush2.bf16.msra.mxu0 0
      %847 = vmatprep.subr.bf16.mxu0 %v817
      %848 = vmatpush2.bf16.msra.mxu0 %v814
      %849 = vmatprep.subr.bf16.mxu0 %v787
      %850 = vmatpush2.bf16.msra.mxu0 %v786
      %851 = vmatprep.mubr.bf16.mxu0 %v810
      %852 = vmatmul.mubr.bf16.gmra.mxu0 %v710
      %v853 = vpop.f32.mrf.mxu0
      %v854 = vadd.f32 %v700, %v853
      %v855 = vpop.f32.mrf.mxu0
      %v856 = vadd.f32 %v701, %v855
      %v857 = vpop.f32.mrf.mxu0
      %v858 = vadd.f32 %v702, %v857
      %v859 = vpop.f32.mrf.mxu0
      %v860 = vadd.f32 %v703, %v859
      %861 = vdwg.mxu0
      %v862 = vmax.f32 %v854, 0.0
      %v863 = vmax.f32 %v856, 0.0
      %v864 = vmax.f32 %v858, 0.0
      %v865 = vmax.f32 %v860, 0.0
      %866 = vst [vmem:[%s273] sm:$0xff] %v862
      %867 = vst [vmem:[%s273 + $0x8] sm:$0xff] %v863
      %868 = vst [vmem:[%s273 + $0x10] sm:$0xff] %v864
      %869 = vst [vmem:[%s273 + $0x18] sm:$0xff] %v865
      %p870 = scmp.lt.s32.totalorder %s19, 1
      %s871 = scalar_select %p870, %s19, 1
      %p872 = scmp.lt.s32.totalorder %s20, 1
      %s873 = scalar_select %p872, %s20, 1
      %s874 = smul.addr %s873, 4
      %s875 = smul.addr %s871, 8
      %s876 = sadd.s32 %s874, %s875
      %s877 = smul.addr %s876, 8
      %s878 = scalar_lea.vmem %s4, %s877
      // Predicated region
      $region37: #{_lambda_.6} parent=35 // pred_check
        %p879 = pneg %p148
      $region38: #{_lambda_.6} parent=35 // pred_check_branch
        %881 = sbr.rel (%p879) target = $region40
      $region39: #{_lambda_.6} parent=35 // pred_region
        _
      $region40: #{_lambda_.6} parent=35 // pred_fallthru
        _
    $region36: #{_lambda_.6} parent=5 // pred_fallthru
      _
    %p882 = scmp.le.s32.totalorder 2, %s10
    // Predicated region
    $region41: #{_lambda_.6} parent=5 // pred_check
      %p883 = pneg %p882
    $region42: #{_lambda_.6} parent=5 // pred_check_branch
      %885 = sbr.rel (%p883) target = $region44
    $region43: #{_lambda_.6} parent=5 // pred_region
      %s886 = ssub.s32 %s10, 2
      // Predicated region
      $region45: #{_lambda_.6} parent=43 // pred_check
        %p887 = pneg %p154
      $region46: #{_lambda_.6} parent=43 // pred_check_branch
        %889 = sbr.rel (%p887) target = $region48
      $region47: #{_lambda_.6} parent=43 // pred_region
        %p890 = scmp.lt.s32.totalorder %s21, 1
        %s891 = scalar_select %p890, %s21, 1
        %p892 = scmp.lt.s32.totalorder %s22, 1
        %s893 = scalar_select %p892, %s22, 1
        %s894 = smul.addr %s893, 4
        %s895 = smul.addr %s891, 8
        %s896 = sadd.s32 %s894, %s895
        %s897 = smul.addr %s896, 8
        %s898 = scalar_lea.vmem %s4, %s897
      $region48: #{_lambda_.6} parent=43 // pred_fallthru
        _
    $region44: #{_lambda_.6} parent=5 // pred_fallthru
      _
  $region6: #{_lambda_.6} parent=0 // loop_footer
    %s14 = sadd.s32 1, %s10
  $region7: #{_lambda_.6} parent=0 // loop_footer_branch
    %9 = sbr.rel target = $region3
  $region8: #{_lambda_.6} parent=0 // loop_exit
    _

// kernel: _lambda_.7
$region0: #{_lambda_.7}
  #allocation0 [shape = 'u32[]', space=smem, size = 0x4, offset = 0x4, fixed_abs, tag = 'smem constant byte address 0x4 - core index']
  #allocation1 [shape = 'u32[144,128]{1,0:T(1,128)}', space=vmem, size = 0x12000, scoped, tag = 'internal scratch']
  %s0 = inlined_call_operand.vmem [shape: bf16[2,48,256], index: 0, kind: input, shape index: {}]
  %s1 = inlined_call_operand.vmem [shape: bf16[64,48], index: 1, kind: input, shape index: {}]
  %s2 = inlined_call_operand.vmem [shape: f32[64,1], index: 2, kind: input, shape index: {}]
  %s3 = inlined_call_operand.vmem [shape: f32[2,64,256], index: 3, kind: output, shape index: {}]
  %s4 = sld [smem:[#allocation0]]
  $region45: #{_lambda_.7} parent=0
    _
  %s6 = ssub.s32 1, %s4
  %s7 = scalar_select 0, %s6, %s4
  loop: start=0, step=1, limit=4
  $region2: #{_lambda_.7} parent=0 // loop_pre_header
    _
  $region3: #{_lambda_.7} parent=0 // loop_header
    %s9 = sphi 0, %s13
    %p10 = scmp.ge.s32.totalorder %s9, 4
    %s16 = sphi 0, %s28
    %s17 = sphi 0, %s24
    %s18 = sphi 0, %s16
    %s19 = sphi 0, %s17
    %s20 = sphi 0, %s18
    %s21 = sphi 0, %s19
    %s33 = sphi 0, %s35
    %s36 = sphi 0, %s33
    %s37 = sphi 0, %s36
    %s53 = sphi 0, %s37
    %s57 = sphi 0, %s57
    %s59 = sphi 0, %s57
    %s60 = sphi 0, %s59
    %s74 = sphi 0, %s60
    %s78 = sphi 0, %s78
    %s80 = sphi 0, %s78
    %s81 = sphi 0, %s80
    %s95 = sphi 0, %s81
    %s103 = sphi 0, %s105
    %s106 = sphi 0, %s103
    %s107 = sphi 0, %s106
    %s123 = sphi 0, %s107
  $region4: #{_lambda_.7} parent=0 // loop_header_branch
    %12 = sbr.rel (%p10) target = $region8
  $region5: #{_lambda_.7} parent=0 // loop_body
    %s14 = ssub.s32 %s9, 1
    %s15 = ssub.s32 %s9, 2
    %s22 = sadd.s32 1, %s17
    %p23 = scmp.ge.s32.totalorder %s22, 1
    %s24 = scalar_select %p23, 0, %s22
    %s25 = sadd.s32 1, %s16
    %s26 = scalar_select %p23, %s25, %s16
    %p27 = scmp.ge.s32.totalorder %s26, 2
    %s28 = scalar_select %p27, 0, %s26
    %s29 = ssub.s32 %s16, %s28
    %s30 = ssub.s32 %s17, %s24
    %s31 = sor.u32 %s29, %s30
    %p32 = scmp.eq.s32.totalorder %s31, 0
    %s34 = sadd.s32 %s33, 1
    %s35 = scalar_select %p32, %s33, %s34
    %p38 = pneg %p32
    %p39 = scmp.eq.s32.totalorder %s9, 1
    %p40 = por %p38, %p39
    %p41 = scmp.ne.s32.totalorder %s33, %s36
    %p42 = scmp.eq.s32.totalorder %s9, 0
    %p43 = por %p41, %p42
    %p44 = scmp.ne.s32.totalorder %s33, %s36
    %p45 = scmp.eq.s32.totalorder %s14, 1
    %p46 = por %p44, %p45
    %p47 = scmp.ne.s32.totalorder %s36, %s37
    %p48 = scmp.eq.s32.totalorder %s14, 0
    %p49 = por %p47, %p48
    %p50 = scmp.ne.s32.totalorder %s36, %s37
    %p51 = scmp.eq.s32.totalorder %s15, 1
    %p52 = por %p50, %p51
    %p54 = scmp.ne.s32.totalorder %s37, %s53
    %p55 = scmp.eq.s32.totalorder %s15, 0
    %p56 = por %p54, %p55
    %s58 = sadd.s32 %s57, 1
    %p61 = scmp.eq.s32.totalorder %s9, 1
    %p62 = scmp.ne.s32.totalorder %s57, %s59
    %p63 = scmp.eq.s32.totalorder %s9, 0
    %p64 = por %p62, %p63
    %p65 = scmp.ne.s32.totalorder %s57, %s59
    %p66 = scmp.eq.s32.totalorder %s14, 1
    %p67 = por %p65, %p66
    %p68 = scmp.ne.s32.totalorder %s59, %s60
    %p69 = scmp.eq.s32.totalorder %s14, 0
    %p70 = por %p68, %p69
    %p71 = scmp.ne.s32.totalorder %s59, %s60
    %p72 = scmp.eq.s32.totalorder %s15, 1
    %p73 = por %p71, %p72
    %p75 = scmp.ne.s32.totalorder %s60, %s74
    %p76 = scmp.eq.s32.totalorder %s15, 0
    %p77 = por %p75, %p76
    %s79 = sadd.s32 %s78, 1
    %p82 = scmp.eq.s32.totalorder %s9, 1
    %p83 = scmp.ne.s32.totalorder %s78, %s80
    %p84 = scmp.eq.s32.totalorder %s9, 0
    %p85 = por %p83, %p84
    %p86 = scmp.ne.s32.totalorder %s78, %s80
    %p87 = scmp.eq.s32.totalorder %s14, 1
    %p88 = por %p86, %p87
    %p89 = scmp.ne.s32.totalorder %s80, %s81
    %p90 = scmp.eq.s32.totalorder %s14, 0
    %p91 = por %p89, %p90
    %p92 = scmp.ne.s32.totalorder %s80, %s81
    %p93 = scmp.eq.s32.totalorder %s15, 1
    %p94 = por %p92, %p93
    %p96 = scmp.ne.s32.totalorder %s81, %s95
    %p97 = scmp.eq.s32.totalorder %s15, 0
    %p98 = por %p96, %p97
    %s99 = ssub.s32 %s16, %s28
    %s100 = ssub.s32 %s17, %s24
    %s101 = sor.u32 %s99, %s100
    %p102 = scmp.eq.s32.totalorder %s101, 0
    %s104 = sadd.s32 %s103, 1
    %s105 = scalar_select %p102, %s103, %s104
    %p108 = pneg %p102
    %p109 = scmp.eq.s32.totalorder %s9, 1
    %p110 = por %p108, %p109
    %p111 = scmp.ne.s32.totalorder %s103, %s106
    %p112 = scmp.eq.s32.totalorder %s9, 0
    %p113 = por %p111, %p112
    %p114 = scmp.ne.s32.totalorder %s103, %s106
    %p115 = scmp.eq.s32.totalorder %s14, 1
    %p116 = por %p114, %p115
    %p117 = scmp.ne.s32.totalorder %s106, %s107
    %p118 = scmp.eq.s32.totalorder %s14, 0
    %p119 = por %p117, %p118
    %p120 = scmp.ne.s32.totalorder %s106, %s107
    %p121 = scmp.eq.s32.totalorder %s15, 1
    %p122 = por %p120, %p121
    %p124 = scmp.ne.s32.totalorder %s107, %s123
    %p125 = scmp.eq.s32.totalorder %s15, 0
    %p126 = por %p124, %p125
    %p127 = scmp.le.s32.totalorder 1, %s9
    %p128 = scmp.lt.s32.totalorder %s9, 3
    %p129 = pnand %p127, %p128
    %p130 = pneg %p129
    // Predicated region
    $region9: #{_lambda_.7} parent=5 // pred_check
      _
    $region10: #{_lambda_.7} parent=5 // pred_check_branch
      %132 = sbr.rel (%p129) target = $region12
    $region11: #{_lambda_.7} parent=5 // pred_region
      %s133 = ssub.s32 %s9, 1
      // Predicated region
      $region13: #{_lambda_.7} parent=11 // pred_check
        %p134 = pneg %p70
      $region14: #{_lambda_.7} parent=11 // pred_check_branch
        %136 = sbr.rel (%p134) target = $region16
      $region15: #{_lambda_.7} parent=11 // pred_region
        _
      $region16: #{_lambda_.7} parent=11 // pred_fallthru
        _
      // Predicated region
      $region17: #{_lambda_.7} parent=11 // pred_check
        %p137 = pneg %p91
      $region18: #{_lambda_.7} parent=11 // pred_check_branch
        %139 = sbr.rel (%p137) target = $region20
      $region19: #{_lambda_.7} parent=11 // pred_region
        _
      $region20: #{_lambda_.7} parent=11 // pred_fallthru
        _
    $region12: #{_lambda_.7} parent=5 // pred_fallthru
      _
    %p140 = scmp.lt.s32.totalorder %s9, 2
    // Predicated region
    $region21: #{_lambda_.7} parent=5 // pred_check
      %p141 = pneg %p140
    $region22: #{_lambda_.7} parent=5 // pred_check_branch
      %143 = sbr.rel (%p141) target = $region24
    $region23: #{_lambda_.7} parent=5 // pred_region
      // Predicated region
      $region25: #{_lambda_.7} parent=23 // pred_check
        %p144 = pneg %p43
      $region26: #{_lambda_.7} parent=23 // pred_check_branch
        %146 = sbr.rel (%p144) target = $region28
      $region27: #{_lambda_.7} parent=23 // pred_region
        %s147 = smul.u32 2, %s17
        %p148 = scmp.lt.s32.totalorder %s16, 1
        %s149 = scalar_select %p148, %s16, 1
        %p150 = scmp.lt.s32.totalorder %s147, 1
        %s151 = scalar_select %p150, %s147, 1
        %s152 = smul.addr %s149, 12
        %s153 = sadd.s32 %s151, %s152
        %s154 = smul.addr %s153, 4
        %s155 = scalar_lea.vmem %s0, %s154
        %s156 = smul.u32 2, %s17
      $region28: #{_lambda_.7} parent=23 // pred_fallthru
        _
    $region24: #{_lambda_.7} parent=5 // pred_fallthru
      _
    %p157 = scmp.le.s32.totalorder 1, %s9
    %p158 = scmp.lt.s32.totalorder %s9, 3
    %p159 = pnand %p157, %p158
    %p160 = pneg %p159
    // Predicated region
    $region29: #{_lambda_.7} parent=5 // pred_check
      _
    $region30: #{_lambda_.7} parent=5 // pred_check_branch
      %162 = sbr.rel (%p159) target = $region32
    $region31: #{_lambda_.7} parent=5 // pred_region
      %s163 = ssub.s32 %s9, 1
      %s164 = smul.u32 2, %s19
      %p165 = scmp.lt.s32.totalorder %s18, 1
      %s166 = scalar_select %p165, %s18, 1
      %p167 = scmp.lt.s32.totalorder %s164, 1
      %s168 = scalar_select %p167, %s164, 1
      %s169 = smul.addr %s166, 12
      %s170 = sadd.s32 %s168, %s169
      %s171 = smul.addr %s170, 4
      %s172 = scalar_lea.vmem %s0, %s171
      %p173 = pneg %p49
      %p174 = pneg %p46
      %p175 = pneg %p70
      %p176 = pneg %p67
      %p177 = pneg %p91
      %p178 = pneg %p88
      %p179 = pneg %p119
      %p180 = pneg %p116
      %s181 = smul.u32 2, %s19
      %p182 = scmp.lt.s32.totalorder %s18, 1
      %s183 = scalar_select %p182, %s18, 1
      %p184 = scmp.lt.s32.totalorder %s181, 1
      %s185 = scalar_select %p184, %s181, 1
      %s186 = smul.addr %s183, 16
      %s187 = sadd.s32 %s185, %s186
      %s188 = smul.addr %s187, 8
      %s189 = scalar_lea.vmem %s3, %s188
      %s190 = smul.u32 2, %s19
      %p191 = scmp.lt.s32.totalorder %s18, 1
      %s192 = scalar_select %p191, %s18, 1
      %p193 = scmp.lt.s32.totalorder %s190, 1
      %s194 = scalar_select %p193, %s190, 1
      %s195 = smul.addr %s192, 12
      %s196 = sadd.s32 %s194, %s195
      %s197 = smul.addr %s196, 4
      %s198 = scalar_lea.vmem %s0, %s197
      %s199 = smul.u32 2, %s19
      %s200 = smul.u32 2, %s19
      %p201 = scmp.lt.s32.totalorder %s18, 1
      %s202 = scalar_select %p201, %s18, 1
      %p203 = scmp.lt.s32.totalorder %s200, 1
      %s204 = scalar_select %p203, %s200, 1
      %s205 = smul.addr %s202, 16
      %s206 = sadd.s32 %s204, %s205
      %s207 = smul.addr %s206, 8
      %s208 = scalar_lea.vmem %s3, %s207
      %s209 = smul.u32 2, %s19
      %v211 = vld [vmem:[%s1] sm:$0xf]
      %v212 = vld [vmem:[%s1 + $0x4] sm:$0xf]
      %v213 = vld [vmem:[%s1 + $0x8] sm:$0xf]
      %v214 = vld [vmem:[%s1 + $0xc] sm:$0xf]
      %v215 = vld [vmem:[%s1 + $0x10] sm:$0xf]
      %v216 = vld [vmem:[%s1 + $0x14] sm:$0xf]
      %v217 = vld [vmem:[%s1 + $0x18] sm:$0xf]
      %v218 = vld [vmem:[%s1 + $0x1c] sm:$0xf]
      %v219 = vld [vmem:[%s198] sm:$0xff]
      %v220 = vld [vmem:[%s198 + $0x8] sm:$0xff]
      %v221 = vld [vmem:[%s198 + $0x10] sm:$0xff]
      %v222 = vld [vmem:[%s198 + $0x18] sm:$0xff]
      %v223 = vld [vmem:[%s198 + $0x20] sm:$0xff]
      %v224 = vld [vmem:[%s198 + $0x28] sm:$0xff]
      %v225 = vld [vmem:[%s2] sm:$0xff]
      %v226 = vld [vmem:[%s2 + $0x8] sm:$0xff]
      %v227 = vld [vmem:[%s2 + $0x10] sm:$0xff]
      %v228 = vld [vmem:[%s2 + $0x18] sm:$0xff]
      %v229 = vld [vmem:[%s2 + $0x20] sm:$0xff]
      %v230 = vld [vmem:[%s2 + $0x28] sm:$0xff]
      %v231 = vld [vmem:[%s2 + $0x30] sm:$0xff]
      %v232 = vld [vmem:[%s2 + $0x38] sm:$0xff]
      %234 = vset.pattern.permute.xlu0 0
      %235 = vperm.xlu0 %234, %v225
      %v236 = vpop.permute.xlu0 %235
      %239 = vset.pattern.permute.xlu0 0
      %240 = vperm.xlu0 %239, %v226
      %v241 = vpop.permute.xlu0 %240
      %244 = vset.pattern.permute.xlu0 0
      %245 = vperm.xlu0 %244, %v227
      %v246 = vpop.permute.xlu0 %245
      %249 = vset.pattern.permute.xlu0 0
      %250 = vperm.xlu0 %249, %v228
      %v251 = vpop.permute.xlu0 %250
      %254 = vset.pattern.permute.xlu0 0
      %255 = vperm.xlu0 %254, %v229
      %v256 = vpop.permute.xlu0 %255
      %259 = vset.pattern.permute.xlu0 0
      %260 = vperm.xlu0 %259, %v230
      %v261 = vpop.permute.xlu0 %260
      %264 = vset.pattern.permute.xlu0 0
      %265 = vperm.xlu0 %264, %v231
      %v266 = vpop.permute.xlu0 %265
      %269 = vset.pattern.permute.xlu0 0
      %270 = vperm.xlu0 %269, %v232
      %v271 = vpop.permute.xlu0 %270
      %v281 = vunpack.c.l.b16 %v211
      %v282 = vunpack.c.l.b16 %v212
      %v283 = vunpack.c.l.b16 %v213
      %v284 = vunpack.c.l.b16 %v214
      %v285 = vunpack.c.l.b16 %v215
      %v286 = vunpack.c.l.b16 %v216
      %v287 = vunpack.c.l.b16 %v217
      %v288 = vunpack.c.l.b16 %v218
      %v289 = vpack.c.b16 %v282, %v281
      %v290 = vpack.c.b16 %v284, %v283
      %v291 = vpack.c.b16 %v286, %v285
      %v292 = vpack.c.b16 %v288, %v287
      %v299 = vunpack.c.l.b16 %v219
      %v300 = vunpack.c.h.b16 %v219
      %v301 = vunpack.c.l.b16 %v220
      %v302 = vunpack.c.h.b16 %v220
      %v303 = vunpack.c.l.b16 %v221
      %v304 = vunpack.c.h.b16 %v221
      %v305 = vunpack.c.l.b16 %v222
      %v306 = vunpack.c.h.b16 %v222
      %v307 = vunpack.c.l.b16 %v223
      %v308 = vunpack.c.h.b16 %v223
      %v309 = vunpack.c.l.b16 %v224
      %v310 = vunpack.c.h.b16 %v224
      %v311 = vpack.c.b16 %v301, %v299
      %v312 = vpack.c.b16 %v302, %v300
      %v313 = vpack.c.b16 %v305, %v303
      %v314 = vpack.c.b16 %v306, %v304
      %v315 = vpack.c.b16 %v309, %v307
      %v316 = vpack.c.b16 %v310, %v308
      %vm323 = vcmask 392192
      %v325 = vsel %vm323, %v289, 0
      %v328 = vsel %vm323, %v290, 0
      %v331 = vsel %vm323, %v291, 0
      %v334 = vsel %vm323, %v292, 0
      %336 = vmatprep.subr.bf16.mxu0 0
      %337 = vmatpush1.bf16.msra.mxu0 0
      %338 = vmatprep.subr.bf16.mxu0 0
      %339 = vmatpush1.bf16.msra.mxu0 0
      %340 = vmatprep.subr.bf16.mxu0 0
      %341 = vmatpush1.bf16.msra.mxu0 0
      %342 = vmatprep.subr.bf16.mxu0 0
      %343 = vmatpush1.bf16.msra.mxu0 0
      %344 = vmatprep.subr.bf16.mxu0 0
      %345 = vmatpush1.bf16.msra.mxu0 0
      %346 = vmatprep.subr.bf16.mxu0 %v316
      %347 = vmatpush1.bf16.msra.mxu0 %v315
      %348 = vmatprep.subr.bf16.mxu0 %v314
      %349 = vmatpush1.bf16.msra.mxu0 %v313
      %350 = vmatprep.subr.bf16.mxu0 %v312
      %351 = vmatpush1.bf16.msra.mxu0 %v311
      %352 = vmatprep.subr.bf16.mxu0 0
      %353 = vmatpush2.bf16.msra.mxu0 0
      %354 = vmatprep.subr.bf16.mxu0 0
      %355 = vmatpush2.bf16.msra.mxu0 0
      %356 = vmatprep.subr.bf16.mxu0 0
      %357 = vmatpush2.bf16.msra.mxu0 0
      %358 = vmatprep.subr.bf16.mxu0 0
      %359 = vmatpush2.bf16.msra.mxu0 0
      %360 = vmatprep.subr.bf16.mxu0 0
      %361 = vmatpush2.bf16.msra.mxu0 0
      %362 = vmatprep.subr.bf16.mxu0 0
      %363 = vmatpush2.bf16.msra.mxu0 0
      %364 = vmatprep.subr.bf16.mxu0 0
      %365 = vmatpush2.bf16.msra.mxu0 0
      %366 = vmatprep.subr.bf16.mxu0 0
      %367 = vmatpush2.bf16.msra.mxu0 0
      %368 = vmatprep.mubr.bf16.mxu0 0
      %369 = vmatmul.mubr.bf16.gmra.mxu0 %v325
      %v370 = vpop.f32.mrf.mxu0
      %v371 = vadd.f32 %v236, %v370
      %v372 = vpop.f32.mrf.mxu0
      %v373 = vadd.f32 %v236, %v372
      %v374 = vpop.f32.mrf.mxu0
      %v375 = vadd.f32 %v241, %v374
      %v376 = vpop.f32.mrf.mxu0
      %v377 = vadd.f32 %v241, %v376
      %378 = vmatprep.mubr.bf16.mxu0 0
      %379 = vmatmul.mubr.bf16.gmra.mxu0 %v328
      %v380 = vpop.f32.mrf.mxu0
      %v381 = vadd.f32 %v246, %v380
      %v382 = vpop.f32.mrf.mxu0
      %v383 = vadd.f32 %v246, %v382
      %v384 = vpop.f32.mrf.mxu0
      %v385 = vadd.f32 %v251, %v384
      %v386 = vpop.f32.mrf.mxu0
      %v387 = vadd.f32 %v251, %v386
      %388 = vmatprep.mubr.bf16.mxu0 0
      %389 = vmatmul.mubr.bf16.gmra.mxu0 %v331
      %v390 = vpop.f32.mrf.mxu0
      %v391 = vadd.f32 %v256, %v390
      %v392 = vpop.f32.mrf.mxu0
      %v393 = vadd.f32 %v256, %v392
      %v394 = vpop.f32.mrf.mxu0
      %v395 = vadd.f32 %v261, %v394
      %v396 = vpop.f32.mrf.mxu0
      %v397 = vadd.f32 %v261, %v396
      %398 = vmatprep.mubr.bf16.mxu0 0
      %399 = vmatmul.mubr.bf16.gmra.mxu0 %v334
      %v400 = vpop.f32.mrf.mxu0
      %v401 = vadd.f32 %v266, %v400
      %v402 = vpop.f32.mrf.mxu0
      %v403 = vadd.f32 %v266, %v402
      %v404 = vpop.f32.mrf.mxu0
      %v405 = vadd.f32 %v271, %v404
      %v406 = vpop.f32.mrf.mxu0
      %v407 = vadd.f32 %v271, %v406
      %408 = vdwg.mxu0
      %v409 = vmax.f32 %v371, 0.0
      %v410 = vmax.f32 %v373, 0.0
      %v411 = vmax.f32 %v375, 0.0
      %v412 = vmax.f32 %v377, 0.0
      %v413 = vmax.f32 %v381, 0.0
      %v414 = vmax.f32 %v383, 0.0
      %v415 = vmax.f32 %v385, 0.0
      %v416 = vmax.f32 %v387, 0.0
      %v417 = vmax.f32 %v391, 0.0
      %v418 = vmax.f32 %v393, 0.0
      %v419 = vmax.f32 %v395, 0.0
      %v420 = vmax.f32 %v397, 0.0
      %v421 = vmax.f32 %v401, 0.0
      %v422 = vmax.f32 %v403, 0.0
      %v423 = vmax.f32 %v405, 0.0
      %v424 = vmax.f32 %v407, 0.0
      %425 = vst [vmem:[%s208] sm:$0xff] %v409
      %426 = vst [vmem:[%s208 + $0x8] sm:$0xff] %v410
      %427 = vst [vmem:[%s208 + $0x10] sm:$0xff] %v411
      %428 = vst [vmem:[%s208 + $0x18] sm:$0xff] %v412
      %429 = vst [vmem:[%s208 + $0x20] sm:$0xff] %v413
      %430 = vst [vmem:[%s208 + $0x28] sm:$0xff] %v414
      %431 = vst [vmem:[%s208 + $0x30] sm:$0xff] %v415
      %432 = vst [vmem:[%s208 + $0x38] sm:$0xff] %v416
      %433 = vst [vmem:[%s208 + $0x40] sm:$0xff] %v417
      %434 = vst [vmem:[%s208 + $0x48] sm:$0xff] %v418
      %435 = vst [vmem:[%s208 + $0x50] sm:$0xff] %v419
      %436 = vst [vmem:[%s208 + $0x58] sm:$0xff] %v420
      %437 = vst [vmem:[%s208 + $0x60] sm:$0xff] %v421
      %438 = vst [vmem:[%s208 + $0x68] sm:$0xff] %v422
      %439 = vst [vmem:[%s208 + $0x70] sm:$0xff] %v423
      %440 = vst [vmem:[%s208 + $0x78] sm:$0xff] %v424
      %s441 = smul.u32 2, %s19
      %p442 = scmp.lt.s32.totalorder %s18, 1
      %s443 = scalar_select %p442, %s18, 1
      %p444 = scmp.lt.s32.totalorder %s441, 1
      %s445 = scalar_select %p444, %s441, 1
      %s446 = smul.addr %s443, 16
      %s447 = sadd.s32 %s445, %s446
      %s448 = smul.addr %s447, 8
      %s449 = scalar_lea.vmem %s3, %s448
      // Predicated region
      $region33: #{_lambda_.7} parent=31 // pred_check
        %p450 = pneg %p116
      $region34: #{_lambda_.7} parent=31 // pred_check_branch
        %452 = sbr.rel (%p450) target = $region36
      $region35: #{_lambda_.7} parent=31 // pred_region
        %s453 = smul.u32 2, %s19
      $region36: #{_lambda_.7} parent=31 // pred_fallthru
        _
    $region32: #{_lambda_.7} parent=5 // pred_fallthru
      _
    %p454 = scmp.le.s32.totalorder 2, %s9
    // Predicated region
    $region37: #{_lambda_.7} parent=5 // pred_check
      %p455 = pneg %p454
    $region38: #{_lambda_.7} parent=5 // pred_check_branch
      %457 = sbr.rel (%p455) target = $region40
    $region39: #{_lambda_.7} parent=5 // pred_region
      %s458 = ssub.s32 %s9, 2
      // Predicated region
      $region41: #{_lambda_.7} parent=39 // pred_check
        %p459 = pneg %p122
      $region42: #{_lambda_.7} parent=39 // pred_check_branch
        %461 = sbr.rel (%p459) target = $region44
      $region43: #{_lambda_.7} parent=39 // pred_region
        %s462 = smul.u32 2, %s21
        %p463 = scmp.lt.s32.totalorder %s20, 1
        %s464 = scalar_select %p463, %s20, 1
        %p465 = scmp.lt.s32.totalorder %s462, 1
        %s466 = scalar_select %p465, %s462, 1
        %s467 = smul.addr %s464, 16
        %s468 = sadd.s32 %s466, %s467
        %s469 = smul.addr %s468, 8
        %s470 = scalar_lea.vmem %s3, %s469
      $region44: #{_lambda_.7} parent=39 // pred_fallthru
        _
    $region40: #{_lambda_.7} parent=5 // pred_fallthru
      _
  $region6: #{_lambda_.7} parent=0 // loop_footer
    %s13 = sadd.s32 1, %s9
  $region7: #{_lambda_.7} parent=0 // loop_footer_branch
    %8 = sbr.rel target = $region3
  $region8: #{_lambda_.7} parent=0 // loop_exit
    _

</llo_original>
